<compile_context>
chip_gen: v5e
topology: v5e:2x2
jax: 0.10.0
libtpu: 0.0.40
codegen_flags: <defaults>
</compile_context>

<pallas_src>
import math

import jax
import jax.numpy as jnp
from jax.experimental import pallas as pl
from jax.experimental.pallas import tpu as pltpu

# Small hyperparameters consistent with the module (input_dim=54 kept exact).
B, S, F = 2, 8, 54          # batch, seq_len, input_dim
FP = 64                     # input_dim zero-padded to a sublane-friendly size
D, H, L = 32, 4, 2          # d_model, nhead, num_layers
HD = D // H                 # per-head dim
FF = 4 * D                  # dim_feedforward = 4 * d_model
BS = B * S                  # rows processed per kernel invocation
EPS = 1e-5
SQRT_D = math.sqrt(D)
SQRT_HD = math.sqrt(HD)
NEG_INF = -1e9
GELU_C = math.sqrt(2.0 / math.pi)


# ---------------------------------------------------------------------------
# Numerics helpers
# ---------------------------------------------------------------------------
def _layer_norm(x, g, b):
    mu = jnp.mean(x, axis=-1, keepdims=True)
    var = jnp.mean((x - mu) ** 2, axis=-1, keepdims=True)
    return (x - mu) * jax.lax.rsqrt(var + EPS) * g + b


def _gelu_tanh(x):
    # tanh-approximate GELU (EUP tanh); ~1e-3 max deviation from exact erf GELU.
    return 0.5 * x * (1.0 + jnp.tanh(GELU_C * (x + 0.044715 * x * x * x)))


def _approx_recip(v):
    return pl.reciprocal(v, approx=True)   # EUP slot, essentially free


def _bf16(v):
    return v.astype(jnp.bfloat16)


# ---------------------------------------------------------------------------
# Pallas kernel: whole encoder forward, full batch, single invocation (no grid)
# ---------------------------------------------------------------------------
def encoder_kernel(x_ref, bias_ref, wp_ref, add0_ref, wqkvo_ref, bqkvo_ref,
                   w1_ref, b1_ref, w2_ref, vecs_ref, gbf_ref, out_ref):
    # Additive attention bias, hoisted once: (H, B*S, B*S).
    # bias_ref already contains key-padding (-1e9) + cross-batch (-1e9) terms.
    bias_h = jnp.broadcast_to(bias_ref[...], (H, BS, BS))

    # Input projection: sqrt(d_model) pre-folded into wp (bf16 weights);
    # add0 = bias*sqrt(d_model) + positional encoding, pre-tiled over batch.
    h = jnp.dot(_bf16(x_ref[...]), wp_ref[...],
                preferred_element_type=jnp.float32) + add0_ref[...]   # (BS, D)

    for l in range(L):                      # static unroll over layers (L=2)
        vec = vecs_ref[l]                   # (6, D): bo', b2, g1, be1, g2, be2
        bo, b2 = vec[0], vec[1]
        g1, be1, g2, be2 = vec[2], vec[3], vec[4], vec[5]

        # ---- multi-head self-attention (post-norm), Wo folded into V ----
        # fused projection: columns = [Q/sqrt(hd) (D), K (D), V' = V@Wo (H*D)]
        proj = jnp.dot(_bf16(h), wqkvo_ref[l],
                       preferred_element_type=jnp.float32) + bqkvo_ref[l]
        q = proj[:, :D]                     # (BS, D), already 1/sqrt(hd)-scaled
        k = proj[:, D:2 * D]                # (BS, D)
        vo = proj[:, 2 * D:]                # (BS, H*D), Wo pre-folded per head

        qh = _bf16(pltpu.einshape("nhd->hnd", q.reshape(BS, H, HD)))   # (H,BS,HD)
        kh = _bf16(pltpu.einshape("nhd->hnd", k.reshape(BS, H, HD)))   # (H,BS,HD)
        vh = _bf16(pltpu.einshape("nhd->hnd", vo.reshape(BS, H, D)))   # (H,BS,D)

        s = jnp.einsum('hqd,hkd->hqk', qh, kh,
                       preferred_element_type=jnp.float32)             # (H,BS,BS)
        # No max-subtraction: scores are tiny, masked entries underflow exp->0.
        e = jnp.exp(s + bias_h)
        p = _bf16(e * _approx_recip(jnp.sum(e, axis=-1, keepdims=True)))
        ctx = jnp.einsum('hqk,hkd->hqd', p, vh,
                         preferred_element_type=jnp.float32)           # (H,BS,D)
        attn = jnp.sum(ctx, axis=0) + bo    # bo' = bo + bv @ Wo (pack time)
        h = _layer_norm(h + attn, g1, be1)

        # ---- feed-forward (tanh GELU) ----
        ff = jnp.dot(_bf16(h), w1_ref[l],
                     preferred_element_type=jnp.float32) + b1_ref[l]
        ff = _gelu_tanh(ff)
        ff = jnp.dot(_bf16(ff), w2_ref[l],
                     preferred_element_type=jnp.float32) + b2
        h = _layer_norm(h + ff, g2, be2)

    out_ref[...] = _layer_norm(h, gbf_ref[0], gbf_ref[1])              # (BS, D)


@jax.jit
def padding_aware_encoder(x, padding_mask, packed):
    """x: (B, S, F) float32; padding_mask: (B, S) bool (True == padded)."""
    x_flat = jnp.pad(x, ((0, 0), (0, 0), (0, FP - F))).reshape(BS, FP)

    # Combined key-padding + cross-batch additive bias, built once per call.
    key_pad = jnp.where(padding_mask, jnp.float32(NEG_INF),
                        jnp.float32(0.0)).reshape(1, BS)
    bid = jnp.arange(BS, dtype=jnp.int32) // S
    cross = jnp.where(bid[:, None] != bid[None, :],
                      jnp.float32(NEG_INF), jnp.float32(0.0))
    attn_bias = (cross + key_pad).astype(jnp.float32)                  # (BS, BS)

    args = (x_flat, attn_bias, packed['wp'], packed['add0'],
            packed['wqkvo'], packed['bqkvo'],
            packed['w1'], packed['b1'], packed['w2'],
            packed['vecs'], packed['gbf'])

    vmem = pl.BlockSpec(memory_space=pltpu.MemorySpace.VMEM)
    out = pl.pallas_call(
        encoder_kernel,
        out_shape=jax.ShapeDtypeStruct((BS, D), jnp.float32),
        in_specs=[vmem] * len(args),
        out_specs=vmem,
    )(*args)
    return out.reshape(B, S, D)


# ---------------------------------------------------------------------------
# Parameters: raw (PyTorch-layout) params + one-time packing for the kernel
# ---------------------------------------------------------------------------
def make_params(key):
    def rnd(k, shape, scale=0.02):
        return (scale * jax.random.normal(k, shape)).astype(jnp.float32)

    ks = iter(jax.random.split(key, 24))

    # positional encoding buffer (same construction as PositionalEncoding)
    pos = jnp.arange(S, dtype=jnp.float32)[:, None]
    div = jnp.exp(jnp.arange(0, D, 2, dtype=jnp.float32) *
                  (-math.log(10000.0) / D))
    pe = jnp.zeros((S, D), jnp.float32)
    pe = pe.at[:, 0::2].set(jnp.sin(pos * div))
    pe = pe.at[:, 1::2].set(jnp.cos(pos * div))

    return {
        'wp': rnd(next(ks), (F, D)), 'bp': rnd(next(ks), (1, D)), 'pe': pe,
        'wq': rnd(next(ks), (L, D, D)), 'bq': rnd(next(ks), (L, D)),
        'wk': rnd(next(ks), (L, D, D)), 'bk': rnd(next(ks), (L, D)),
        'wv': rnd(next(ks), (L, D, D)), 'bv': rnd(next(ks), (L, D)),
        'wo': rnd(next(ks), (L, D, D)), 'bo': rnd(next(ks), (L, D)),
        'g1': 1.0 + rnd(next(ks), (L, D), 0.05), 'be1': rnd(next(ks), (L, D)),
        'w1': rnd(next(ks), (L, D, FF)), 'bb1': rnd(next(ks), (L, FF)),
        'w2': rnd(next(ks), (L, FF, D)), 'bb2': rnd(next(ks), (L, D)),
        'g2': 1.0 + rnd(next(ks), (L, D), 0.05), 'be2': rnd(next(ks), (L, D)),
        'gf': 1.0 + rnd(next(ks), (1, D), 0.05), 'bf': rnd(next(ks), (1, D)),
    }


def pack_params(p):
    """One-time parameter preprocessing into the kernel's packed operand set."""
    # input projection: sqrt(d_model) folded in, padded to FP rows, bf16
    wp = (jnp.pad(p['wp'], ((0, FP - F), (0, 0))) * SQRT_D).astype(jnp.bfloat16)
    # add0 = bias*sqrt(d_model) + pos-enc, pre-tiled over the batch  (BS, D) f32
    add0 = jnp.tile(p['bp'][0] * SQRT_D + p['pe'], (B, 1))
    # Fold Wo into V per head: Wvo[:, h*D:(h+1)*D] = Wv[:, h-slice] @ Wo[h-slice, :]
    wvo = jnp.concatenate(
        [p['wv'][:, :, h * HD:(h + 1) * HD] @ p['wo'][:, h * HD:(h + 1) * HD, :]
         for h in range(H)], axis=-1)                                  # (L, D, H*D)
    wqkvo = jnp.concatenate(
        [p['wq'] * (1.0 / SQRT_HD), p['wk'], wvo],
        axis=-1).astype(jnp.bfloat16)                                  # (L, D, 2D+H*D)
    bqkvo = jnp.concatenate(
        [p['bq'] * (1.0 / SQRT_HD), p['bk'],
         jnp.zeros((L, H * D), jnp.float32)], axis=-1)                 # (L, 2D+H*D)
    # bo' = bo + bv @ Wo (exact because softmax rows sum to 1)
    bo_p = p['bo'] + jnp.einsum('ld,lde->le', p['bv'], p['wo'])        # (L, D)
    vecs = jnp.stack([bo_p, p['bb2'], p['g1'], p['be1'],
                      p['g2'], p['be2']], axis=1)                      # (L, 6, D)
    gbf = jnp.concatenate([p['gf'], p['bf']], axis=0)                  # (2, D)
    return {'wp': wp, 'add0': add0, 'wqkvo': wqkvo, 'bqkvo': bqkvo,
            'w1': p['w1'].astype(jnp.bfloat16), 'b1': p['bb1'],
            'w2': p['w2'].astype(jnp.bfloat16),
            'vecs': vecs, 'gbf': gbf}


# Pure-JAX reference on the RAW params (PyTorch-faithful f32 math, exact GELU).
def reference(x, mask_bool, p):
    h = x @ p['wp'] + p['bp'][0]
    h = h * SQRT_D + p['pe'][None]
    neg = jnp.where(mask_bool, NEG_INF, 0.0)[:, None, None, :]         # (B,1,1,S)
    for l in range(L):
        q = h @ p['wq'][l] + p['bq'][l]
        k = h @ p['wk'][l] + p['bk'][l]
        v = h @ p['wv'][l] + p['bv'][l]
        qh = q.reshape(B, S, H, HD).transpose(0, 2, 1, 3)
        kh = k.reshape(B, S, H, HD).transpose(0, 2, 1, 3)
        vh = v.reshape(B, S, H, HD).transpose(0, 2, 1, 3)
        s = jnp.einsum('bhqd,bhkd->bhqk', qh, kh) / SQRT_HD + neg
        a = jax.nn.softmax(s, axis=-1)
        o = jnp.einsum('bhqk,bhkd->bhqd', a, vh)
        o = o.transpose(0, 2, 1, 3).reshape(B, S, D)
        o = o @ p['wo'][l] + p['bo'][l]
        h = _layer_norm(h + o, p['g1'][l], p['be1'][l])
        ff = jax.nn.gelu(h @ p['w1'][l] + p['bb1'][l], approximate=False)
        ff = ff @ p['w2'][l] + p['bb2'][l]
        h = _layer_norm(h + ff, p['g2'][l], p['be2'][l])
    return _layer_norm(h, p['gf'][0], p['bf'][0])


if __name__ == "__main__":
    key = jax.random.PRNGKey(0)
    k_x, k_p = jax.random.split(key)
    x = jax.random.normal(k_x, (B, S, F), dtype=jnp.float32)
    # padding mask: True == padded (batch 1 has its last 2 steps padded)
    padding_mask = jnp.array(
        [[False] * S,
         [False] * (S - 2) + [True] * 2], dtype=bool)

    params = make_params(k_p)      # raw PyTorch-layout params (reference)
    packed = pack_params(params)   # packed/prefolded bf16 operands (kernel)

    out = jax.block_until_ready(padding_aware_encoder(x, padding_mask, packed))
    ref = jax.block_until_ready(reference(x, padding_mask, params))

    # NOTE: dropout (p=0.1) in TransformerEncoderLayer is identity in eval mode.
    # Tolerance 2e-2 budgets the intentional deviations adopted per the perf
    # review: bf16 MXU operands (f32 accumulate), tanh-approximate GELU,
    # approx reciprocal in softmax. Reference is exact-f32 / exact-erf GELU.
    assert out.shape == (B, S, D)
    assert bool(jnp.all(jnp.isfinite(out)))
    max_err = float(jnp.max(jnp.abs(out - ref)))
    assert bool(jnp.allclose(out, ref, rtol=2e-2, atol=2e-2)), \
        f"max abs err {max_err}"
    print("KERNEL_OK")
</pallas_src>

<mosaic_0001>
module attributes {stable_mosaic.version = 11 : i64} {
  func.func @encoder_kernel(%arg0: memref<16x64xf32, #tpu.memory_space<vmem>>, %arg1: memref<16x16xf32, #tpu.memory_space<vmem>>, %arg2: memref<64x32xbf16, #tpu.memory_space<vmem>>, %arg3: memref<16x32xf32, #tpu.memory_space<vmem>>, %arg4: memref<2x32x192xbf16, #tpu.memory_space<vmem>>, %arg5: memref<2x192xf32, #tpu.memory_space<vmem>>, %arg6: memref<2x32x128xbf16, #tpu.memory_space<vmem>>, %arg7: memref<2x128xf32, #tpu.memory_space<vmem>>, %arg8: memref<2x128x32xbf16, #tpu.memory_space<vmem>>, %arg9: memref<2x6x32xf32, #tpu.memory_space<vmem>>, %arg10: memref<2x32xf32, #tpu.memory_space<vmem>>, %arg11: memref<16x32xf32, #tpu.memory_space<vmem>>) attributes {dimension_semantics = [], scalar_prefetch = 0 : i64, scratch_operands = 0 : i64, tpu.core_type = #tpu.core_type<tc>} {
    %c0 = arith.constant 0 : index
    %c0_0 = arith.constant 0 : index
    %0 = vector.load %arg1[%c0, %c0_0] : memref<16x16xf32, #tpu.memory_space<vmem>>, vector<16x16xf32>
    %1 = vector.shape_cast %0 : vector<16x16xf32> to vector<1x16x16xf32>
    %2 = vector.broadcast %1 : vector<1x16x16xf32> to vector<4x16x16xf32>
    %c0_1 = arith.constant 0 : index
    %c0_2 = arith.constant 0 : index
    %3 = vector.load %arg0[%c0_1, %c0_2] : memref<16x64xf32, #tpu.memory_space<vmem>>, vector<16x64xf32>
    %4 = arith.truncf %3 : vector<16x64xf32> to vector<16x64xbf16>
    %c0_3 = arith.constant 0 : index
    %c0_4 = arith.constant 0 : index
    %5 = vector.load %arg2[%c0_3, %c0_4] : memref<64x32xbf16, #tpu.memory_space<vmem>>, vector<64x32xbf16>
    %cst = arith.constant dense<0.000000e+00> : vector<16x32xf32>
    %6 = tpu.matmul %4, %5, %cst {dimension_numbers = #tpu.dot_dimension_numbers<[1], [0], [0], [1], [0, 0, 1, 1], [], []>} : vector<16x64xbf16>, vector<64x32xbf16>, vector<16x32xf32> -> vector<16x32xf32>
    %c0_5 = arith.constant 0 : index
    %c0_6 = arith.constant 0 : index
    %7 = vector.load %arg3[%c0_5, %c0_6] : memref<16x32xf32, #tpu.memory_space<vmem>>, vector<16x32xf32>
    %8 = arith.addf %6, %7 : vector<16x32xf32>
    %c0_7 = arith.constant 0 : index
    %c0_8 = arith.constant 0 : index
    %c0_9 = arith.constant 0 : index
    %9 = vector.load %arg9[%c0_7, %c0_8, %c0_9] : memref<2x6x32xf32, #tpu.memory_space<vmem>>, vector<1x6x32xf32>
    %10 = vector.shape_cast %9 : vector<1x6x32xf32> to vector<6x32xf32>
    %11 = vector.extract_strided_slice %10 {offsets = [0, 0], sizes = [1, 32], strides = [1, 1]} : vector<6x32xf32> to vector<1x32xf32>
    %12 = vector.shape_cast %11 : vector<1x32xf32> to vector<32xf32>
    %13 = vector.extract_strided_slice %10 {offsets = [1, 0], sizes = [1, 32], strides = [1, 1]} : vector<6x32xf32> to vector<1x32xf32>
    %14 = vector.shape_cast %13 : vector<1x32xf32> to vector<32xf32>
    %15 = vector.extract_strided_slice %10 {offsets = [2, 0], sizes = [1, 32], strides = [1, 1]} : vector<6x32xf32> to vector<1x32xf32>
    %16 = vector.shape_cast %15 : vector<1x32xf32> to vector<32xf32>
    %17 = vector.extract_strided_slice %10 {offsets = [3, 0], sizes = [1, 32], strides = [1, 1]} : vector<6x32xf32> to vector<1x32xf32>
    %18 = vector.shape_cast %17 : vector<1x32xf32> to vector<32xf32>
    %19 = vector.extract_strided_slice %10 {offsets = [4, 0], sizes = [1, 32], strides = [1, 1]} : vector<6x32xf32> to vector<1x32xf32>
    %20 = vector.shape_cast %19 : vector<1x32xf32> to vector<32xf32>
    %21 = vector.extract_strided_slice %10 {offsets = [5, 0], sizes = [1, 32], strides = [1, 1]} : vector<6x32xf32> to vector<1x32xf32>
    %22 = vector.shape_cast %21 : vector<1x32xf32> to vector<32xf32>
    %23 = arith.truncf %8 : vector<16x32xf32> to vector<16x32xbf16>
    %c0_10 = arith.constant 0 : index
    %c0_11 = arith.constant 0 : index
    %c0_12 = arith.constant 0 : index
    %24 = vector.load %arg4[%c0_10, %c0_11, %c0_12] : memref<2x32x192xbf16, #tpu.memory_space<vmem>>, vector<1x32x192xbf16>
    %25 = vector.shape_cast %24 : vector<1x32x192xbf16> to vector<32x192xbf16>
    %cst_13 = arith.constant dense<0.000000e+00> : vector<16x192xf32>
    %26 = tpu.matmul %23, %25, %cst_13 {dimension_numbers = #tpu.dot_dimension_numbers<[1], [0], [0], [1], [0, 0, 1, 1], [], []>} : vector<16x32xbf16>, vector<32x192xbf16>, vector<16x192xf32> -> vector<16x192xf32>
    %c0_14 = arith.constant 0 : index
    %c0_15 = arith.constant 0 : index
    %27 = vector.load %arg5[%c0_14, %c0_15] : memref<2x192xf32, #tpu.memory_space<vmem>>, vector<1x192xf32>
    %28 = vector.shape_cast %27 : vector<1x192xf32> to vector<192xf32>
    %29 = vector.shape_cast %28 : vector<192xf32> to vector<1x192xf32>
    %30 = vector.broadcast %29 : vector<1x192xf32> to vector<16x192xf32>
    %31 = arith.addf %26, %30 : vector<16x192xf32>
    %32 = vector.extract_strided_slice %31 {offsets = [0, 0], sizes = [16, 32], strides = [1, 1]} : vector<16x192xf32> to vector<16x32xf32>
    %33 = vector.extract_strided_slice %31 {offsets = [0, 32], sizes = [16, 32], strides = [1, 1]} : vector<16x192xf32> to vector<16x32xf32>
    %34 = vector.extract_strided_slice %31 {offsets = [0, 64], sizes = [16, 128], strides = [1, 1]} : vector<16x192xf32> to vector<16x128xf32>
    %35 = vector.shape_cast %32 : vector<16x32xf32> to vector<16x4x8xf32>
    %36 = tpu.transpose %35, [1, 0, 2] : vector<16x4x8xf32> -> vector<4x16x8xf32>
    %37 = arith.truncf %36 : vector<4x16x8xf32> to vector<4x16x8xbf16>
    %38 = vector.shape_cast %33 : vector<16x32xf32> to vector<16x4x8xf32>
    %39 = tpu.transpose %38, [1, 0, 2] : vector<16x4x8xf32> -> vector<4x16x8xf32>
    %40 = arith.truncf %39 : vector<4x16x8xf32> to vector<4x16x8xbf16>
    %41 = vector.shape_cast %34 : vector<16x128xf32> to vector<16x4x32xf32>
    %42 = tpu.transpose %41, [1, 0, 2] : vector<16x4x32xf32> -> vector<4x16x32xf32>
    %43 = arith.truncf %42 : vector<4x16x32xf32> to vector<4x16x32xbf16>
    "tpu.trace_start"() <{level = 10 : i32, message = "hqd,hkd->hqk"}> : () -> ()
    %cst_16 = arith.constant dense<0.000000e+00> : vector<4x16x16xf32>
    %44 = tpu.matmul %37, %40, %cst_16 {dimension_numbers = #tpu.dot_dimension_numbers<[2], [2], [1], [1], [0, 0, 0, 1, 1, 1], [0], [0]>} : vector<4x16x8xbf16>, vector<4x16x8xbf16>, vector<4x16x16xf32> -> vector<4x16x16xf32>
    "tpu.trace_stop"() : () -> ()
    %45 = arith.addf %44, %2 : vector<4x16x16xf32>
    %46 = math.exp %45 : vector<4x16x16xf32>
    %cst_17 = arith.constant dense<0.000000e+00> : vector<4x16xf32>
    %47 = vector.multi_reduction <add>, %46, %cst_17 [2] : vector<4x16x16xf32> to vector<4x16xf32>
    %48 = vector.shape_cast %47 : vector<4x16xf32> to vector<4x16x1xf32>
    %49 = tpu.reciprocal %48 {approx = true} : vector<4x16x1xf32> -> vector<4x16x1xf32>
    %50 = vector.broadcast %49 : vector<4x16x1xf32> to vector<4x16x16xf32>
    %51 = arith.mulf %46, %50 : vector<4x16x16xf32>
    %52 = arith.truncf %51 : vector<4x16x16xf32> to vector<4x16x16xbf16>
    "tpu.trace_start"() <{level = 10 : i32, message = "hqk,hkd->hqd"}> : () -> ()
    %cst_18 = arith.constant dense<0.000000e+00> : vector<4x16x32xf32>
    %53 = tpu.matmul %52, %43, %cst_18 {dimension_numbers = #tpu.dot_dimension_numbers<[2], [1], [1], [2], [0, 0, 0, 1, 1, 2], [0], [0]>} : vector<4x16x16xbf16>, vector<4x16x32xbf16>, vector<4x16x32xf32> -> vector<4x16x32xf32>
    "tpu.trace_stop"() : () -> ()
    %cst_19 = arith.constant dense<0.000000e+00> : vector<16x32xf32>
    %54 = vector.multi_reduction <add>, %53, %cst_19 [0] : vector<4x16x32xf32> to vector<16x32xf32>
    %55 = vector.shape_cast %12 : vector<32xf32> to vector<1x32xf32>
    %56 = vector.broadcast %55 : vector<1x32xf32> to vector<16x32xf32>
    %57 = arith.addf %54, %56 : vector<16x32xf32>
    %58 = arith.addf %8, %57 : vector<16x32xf32>
    %cst_20 = arith.constant dense<0.000000e+00> : vector<16xf32>
    %59 = vector.multi_reduction <add>, %58, %cst_20 [1] : vector<16x32xf32> to vector<16xf32>
    %60 = vector.shape_cast %59 : vector<16xf32> to vector<16x1xf32>
    %cst_21 = arith.constant 3.200000e+01 : f32
    %61 = vector.broadcast %cst_21 : f32 to vector<16x1xf32>
    %62 = arith.divf %60, %61 : vector<16x1xf32>
    %63 = vector.broadcast %62 : vector<16x1xf32> to vector<16x32xf32>
    %64 = arith.subf %58, %63 : vector<16x32xf32>
    %65 = arith.mulf %64, %64 : vector<16x32xf32>
    %cst_22 = arith.constant dense<0.000000e+00> : vector<16xf32>
    %66 = vector.multi_reduction <add>, %65, %cst_22 [1] : vector<16x32xf32> to vector<16xf32>
    %67 = vector.shape_cast %66 : vector<16xf32> to vector<16x1xf32>
    %cst_23 = arith.constant 3.200000e+01 : f32
    %68 = vector.broadcast %cst_23 : f32 to vector<16x1xf32>
    %69 = arith.divf %67, %68 : vector<16x1xf32>
    %70 = vector.broadcast %62 : vector<16x1xf32> to vector<16x32xf32>
    %71 = arith.subf %58, %70 : vector<16x32xf32>
    %cst_24 = arith.constant 9.99999974E-6 : f32
    %72 = vector.broadcast %cst_24 : f32 to vector<16x1xf32>
    %73 = arith.addf %69, %72 : vector<16x1xf32>
    %74 = math.rsqrt %73 : vector<16x1xf32>
    %75 = vector.broadcast %74 : vector<16x1xf32> to vector<16x32xf32>
    %76 = arith.mulf %71, %75 : vector<16x32xf32>
    %77 = vector.shape_cast %16 : vector<32xf32> to vector<1x32xf32>
    %78 = vector.broadcast %77 : vector<1x32xf32> to vector<16x32xf32>
    %79 = arith.mulf %76, %78 : vector<16x32xf32>
    %80 = vector.shape_cast %18 : vector<32xf32> to vector<1x32xf32>
    %81 = vector.broadcast %80 : vector<1x32xf32> to vector<16x32xf32>
    %82 = arith.addf %79, %81 : vector<16x32xf32>
    %83 = arith.truncf %82 : vector<16x32xf32> to vector<16x32xbf16>
    %c0_25 = arith.constant 0 : index
    %c0_26 = arith.constant 0 : index
    %c0_27 = arith.constant 0 : index
    %84 = vector.load %arg6[%c0_25, %c0_26, %c0_27] : memref<2x32x128xbf16, #tpu.memory_space<vmem>>, vector<1x32x128xbf16>
    %85 = vector.shape_cast %84 : vector<1x32x128xbf16> to vector<32x128xbf16>
    %cst_28 = arith.constant dense<0.000000e+00> : vector<16x128xf32>
    %86 = tpu.matmul %83, %85, %cst_28 {dimension_numbers = #tpu.dot_dimension_numbers<[1], [0], [0], [1], [0, 0, 1, 1], [], []>} : vector<16x32xbf16>, vector<32x128xbf16>, vector<16x128xf32> -> vector<16x128xf32>
    %c0_29 = arith.constant 0 : index
    %c0_30 = arith.constant 0 : index
    %87 = vector.load %arg7[%c0_29, %c0_30] : memref<2x128xf32, #tpu.memory_space<vmem>>, vector<1x128xf32>
    %88 = vector.shape_cast %87 : vector<1x128xf32> to vector<128xf32>
    %89 = vector.shape_cast %88 : vector<128xf32> to vector<1x128xf32>
    %90 = vector.broadcast %89 : vector<1x128xf32> to vector<16x128xf32>
    %91 = arith.addf %86, %90 : vector<16x128xf32>
    %cst_31 = arith.constant 5.000000e-01 : f32
    %92 = vector.broadcast %cst_31 : f32 to vector<16x128xf32>
    %93 = arith.mulf %92, %91 : vector<16x128xf32>
    %cst_32 = arith.constant 4.471500e-02 : f32
    %94 = vector.broadcast %cst_32 : f32 to vector<16x128xf32>
    %95 = arith.mulf %94, %91 : vector<16x128xf32>
    %96 = arith.mulf %95, %91 : vector<16x128xf32>
    %97 = arith.mulf %96, %91 : vector<16x128xf32>
    %98 = arith.addf %91, %97 : vector<16x128xf32>
    %cst_33 = arith.constant 0.797884583 : f32
    %99 = vector.broadcast %cst_33 : f32 to vector<16x128xf32>
    %100 = arith.mulf %99, %98 : vector<16x128xf32>
    %101 = math.tanh %100 : vector<16x128xf32>
    %cst_34 = arith.constant 1.000000e+00 : f32
    %102 = vector.broadcast %cst_34 : f32 to vector<16x128xf32>
    %103 = arith.addf %102, %101 : vector<16x128xf32>
    %104 = arith.mulf %93, %103 : vector<16x128xf32>
    %105 = arith.truncf %104 : vector<16x128xf32> to vector<16x128xbf16>
    %c0_35 = arith.constant 0 : index
    %c0_36 = arith.constant 0 : index
    %c0_37 = arith.constant 0 : index
    %106 = vector.load %arg8[%c0_35, %c0_36, %c0_37] : memref<2x128x32xbf16, #tpu.memory_space<vmem>>, vector<1x128x32xbf16>
    %107 = vector.shape_cast %106 : vector<1x128x32xbf16> to vector<128x32xbf16>
    %cst_38 = arith.constant dense<0.000000e+00> : vector<16x32xf32>
    %108 = tpu.matmul %105, %107, %cst_38 {dimension_numbers = #tpu.dot_dimension_numbers<[1], [0], [0], [1], [0, 0, 1, 1], [], []>} : vector<16x128xbf16>, vector<128x32xbf16>, vector<16x32xf32> -> vector<16x32xf32>
    %109 = vector.shape_cast %14 : vector<32xf32> to vector<1x32xf32>
    %110 = vector.broadcast %109 : vector<1x32xf32> to vector<16x32xf32>
    %111 = arith.addf %108, %110 : vector<16x32xf32>
    %112 = arith.addf %82, %111 : vector<16x32xf32>
    %cst_39 = arith.constant dense<0.000000e+00> : vector<16xf32>
    %113 = vector.multi_reduction <add>, %112, %cst_39 [1] : vector<16x32xf32> to vector<16xf32>
    %114 = vector.shape_cast %113 : vector<16xf32> to vector<16x1xf32>
    %cst_40 = arith.constant 3.200000e+01 : f32
    %115 = vector.broadcast %cst_40 : f32 to vector<16x1xf32>
    %116 = arith.divf %114, %115 : vector<16x1xf32>
    %117 = vector.broadcast %116 : vector<16x1xf32> to vector<16x32xf32>
    %118 = arith.subf %112, %117 : vector<16x32xf32>
    %119 = arith.mulf %118, %118 : vector<16x32xf32>
    %cst_41 = arith.constant dense<0.000000e+00> : vector<16xf32>
    %120 = vector.multi_reduction <add>, %119, %cst_41 [1] : vector<16x32xf32> to vector<16xf32>
    %121 = vector.shape_cast %120 : vector<16xf32> to vector<16x1xf32>
    %cst_42 = arith.constant 3.200000e+01 : f32
    %122 = vector.broadcast %cst_42 : f32 to vector<16x1xf32>
    %123 = arith.divf %121, %122 : vector<16x1xf32>
    %124 = vector.broadcast %116 : vector<16x1xf32> to vector<16x32xf32>
    %125 = arith.subf %112, %124 : vector<16x32xf32>
    %cst_43 = arith.constant 9.99999974E-6 : f32
    %126 = vector.broadcast %cst_43 : f32 to vector<16x1xf32>
    %127 = arith.addf %123, %126 : vector<16x1xf32>
    %128 = math.rsqrt %127 : vector<16x1xf32>
    %129 = vector.broadcast %128 : vector<16x1xf32> to vector<16x32xf32>
    %130 = arith.mulf %125, %129 : vector<16x32xf32>
    %131 = vector.shape_cast %20 : vector<32xf32> to vector<1x32xf32>
    %132 = vector.broadcast %131 : vector<1x32xf32> to vector<16x32xf32>
    %133 = arith.mulf %130, %132 : vector<16x32xf32>
    %134 = vector.shape_cast %22 : vector<32xf32> to vector<1x32xf32>
    %135 = vector.broadcast %134 : vector<1x32xf32> to vector<16x32xf32>
    %136 = arith.addf %133, %135 : vector<16x32xf32>
    %c1 = arith.constant 1 : index
    %c0_44 = arith.constant 0 : index
    %c0_45 = arith.constant 0 : index
    %137 = vector.load %arg9[%c1, %c0_44, %c0_45] : memref<2x6x32xf32, #tpu.memory_space<vmem>>, vector<1x6x32xf32>
    %138 = vector.shape_cast %137 : vector<1x6x32xf32> to vector<6x32xf32>
    %139 = vector.extract_strided_slice %138 {offsets = [0, 0], sizes = [1, 32], strides = [1, 1]} : vector<6x32xf32> to vector<1x32xf32>
    %140 = vector.shape_cast %139 : vector<1x32xf32> to vector<32xf32>
    %141 = vector.extract_strided_slice %138 {offsets = [1, 0], sizes = [1, 32], strides = [1, 1]} : vector<6x32xf32> to vector<1x32xf32>
    %142 = vector.shape_cast %141 : vector<1x32xf32> to vector<32xf32>
    %143 = vector.extract_strided_slice %138 {offsets = [2, 0], sizes = [1, 32], strides = [1, 1]} : vector<6x32xf32> to vector<1x32xf32>
    %144 = vector.shape_cast %143 : vector<1x32xf32> to vector<32xf32>
    %145 = vector.extract_strided_slice %138 {offsets = [3, 0], sizes = [1, 32], strides = [1, 1]} : vector<6x32xf32> to vector<1x32xf32>
    %146 = vector.shape_cast %145 : vector<1x32xf32> to vector<32xf32>
    %147 = vector.extract_strided_slice %138 {offsets = [4, 0], sizes = [1, 32], strides = [1, 1]} : vector<6x32xf32> to vector<1x32xf32>
    %148 = vector.shape_cast %147 : vector<1x32xf32> to vector<32xf32>
    %149 = vector.extract_strided_slice %138 {offsets = [5, 0], sizes = [1, 32], strides = [1, 1]} : vector<6x32xf32> to vector<1x32xf32>
    %150 = vector.shape_cast %149 : vector<1x32xf32> to vector<32xf32>
    %151 = arith.truncf %136 : vector<16x32xf32> to vector<16x32xbf16>
    %c1_46 = arith.constant 1 : index
    %c0_47 = arith.constant 0 : index
    %c0_48 = arith.constant 0 : index
    %152 = vector.load %arg4[%c1_46, %c0_47, %c0_48] : memref<2x32x192xbf16, #tpu.memory_space<vmem>>, vector<1x32x192xbf16>
    %153 = vector.shape_cast %152 : vector<1x32x192xbf16> to vector<32x192xbf16>
    %cst_49 = arith.constant dense<0.000000e+00> : vector<16x192xf32>
    %154 = tpu.matmul %151, %153, %cst_49 {dimension_numbers = #tpu.dot_dimension_numbers<[1], [0], [0], [1], [0, 0, 1, 1], [], []>} : vector<16x32xbf16>, vector<32x192xbf16>, vector<16x192xf32> -> vector<16x192xf32>
    %c1_50 = arith.constant 1 : index
    %c0_51 = arith.constant 0 : index
    %155 = vector.load %arg5[%c1_50, %c0_51] : memref<2x192xf32, #tpu.memory_space<vmem>>, vector<1x192xf32>
    %156 = vector.shape_cast %155 : vector<1x192xf32> to vector<192xf32>
    %157 = vector.shape_cast %156 : vector<192xf32> to vector<1x192xf32>
    %158 = vector.broadcast %157 : vector<1x192xf32> to vector<16x192xf32>
    %159 = arith.addf %154, %158 : vector<16x192xf32>
    %160 = vector.extract_strided_slice %159 {offsets = [0, 0], sizes = [16, 32], strides = [1, 1]} : vector<16x192xf32> to vector<16x32xf32>
    %161 = vector.extract_strided_slice %159 {offsets = [0, 32], sizes = [16, 32], strides = [1, 1]} : vector<16x192xf32> to vector<16x32xf32>
    %162 = vector.extract_strided_slice %159 {offsets = [0, 64], sizes = [16, 128], strides = [1, 1]} : vector<16x192xf32> to vector<16x128xf32>
    %163 = vector.shape_cast %160 : vector<16x32xf32> to vector<16x4x8xf32>
    %164 = tpu.transpose %163, [1, 0, 2] : vector<16x4x8xf32> -> vector<4x16x8xf32>
    %165 = arith.truncf %164 : vector<4x16x8xf32> to vector<4x16x8xbf16>
    %166 = vector.shape_cast %161 : vector<16x32xf32> to vector<16x4x8xf32>
    %167 = tpu.transpose %166, [1, 0, 2] : vector<16x4x8xf32> -> vector<4x16x8xf32>
    %168 = arith.truncf %167 : vector<4x16x8xf32> to vector<4x16x8xbf16>
    %169 = vector.shape_cast %162 : vector<16x128xf32> to vector<16x4x32xf32>
    %170 = tpu.transpose %169, [1, 0, 2] : vector<16x4x32xf32> -> vector<4x16x32xf32>
    %171 = arith.truncf %170 : vector<4x16x32xf32> to vector<4x16x32xbf16>
    "tpu.trace_start"() <{level = 10 : i32, message = "hqd,hkd->hqk"}> : () -> ()
    %cst_52 = arith.constant dense<0.000000e+00> : vector<4x16x16xf32>
    %172 = tpu.matmul %165, %168, %cst_52 {dimension_numbers = #tpu.dot_dimension_numbers<[2], [2], [1], [1], [0, 0, 0, 1, 1, 1], [0], [0]>} : vector<4x16x8xbf16>, vector<4x16x8xbf16>, vector<4x16x16xf32> -> vector<4x16x16xf32>
    "tpu.trace_stop"() : () -> ()
    %173 = arith.addf %172, %2 : vector<4x16x16xf32>
    %174 = math.exp %173 : vector<4x16x16xf32>
    %cst_53 = arith.constant dense<0.000000e+00> : vector<4x16xf32>
    %175 = vector.multi_reduction <add>, %174, %cst_53 [2] : vector<4x16x16xf32> to vector<4x16xf32>
    %176 = vector.shape_cast %175 : vector<4x16xf32> to vector<4x16x1xf32>
    %177 = tpu.reciprocal %176 {approx = true} : vector<4x16x1xf32> -> vector<4x16x1xf32>
    %178 = vector.broadcast %177 : vector<4x16x1xf32> to vector<4x16x16xf32>
    %179 = arith.mulf %174, %178 : vector<4x16x16xf32>
    %180 = arith.truncf %179 : vector<4x16x16xf32> to vector<4x16x16xbf16>
    "tpu.trace_start"() <{level = 10 : i32, message = "hqk,hkd->hqd"}> : () -> ()
    %cst_54 = arith.constant dense<0.000000e+00> : vector<4x16x32xf32>
    %181 = tpu.matmul %180, %171, %cst_54 {dimension_numbers = #tpu.dot_dimension_numbers<[2], [1], [1], [2], [0, 0, 0, 1, 1, 2], [0], [0]>} : vector<4x16x16xbf16>, vector<4x16x32xbf16>, vector<4x16x32xf32> -> vector<4x16x32xf32>
    "tpu.trace_stop"() : () -> ()
    %cst_55 = arith.constant dense<0.000000e+00> : vector<16x32xf32>
    %182 = vector.multi_reduction <add>, %181, %cst_55 [0] : vector<4x16x32xf32> to vector<16x32xf32>
    %183 = vector.shape_cast %140 : vector<32xf32> to vector<1x32xf32>
    %184 = vector.broadcast %183 : vector<1x32xf32> to vector<16x32xf32>
    %185 = arith.addf %182, %184 : vector<16x32xf32>
    %186 = arith.addf %136, %185 : vector<16x32xf32>
    %cst_56 = arith.constant dense<0.000000e+00> : vector<16xf32>
    %187 = vector.multi_reduction <add>, %186, %cst_56 [1] : vector<16x32xf32> to vector<16xf32>
    %188 = vector.shape_cast %187 : vector<16xf32> to vector<16x1xf32>
    %cst_57 = arith.constant 3.200000e+01 : f32
    %189 = vector.broadcast %cst_57 : f32 to vector<16x1xf32>
    %190 = arith.divf %188, %189 : vector<16x1xf32>
    %191 = vector.broadcast %190 : vector<16x1xf32> to vector<16x32xf32>
    %192 = arith.subf %186, %191 : vector<16x32xf32>
    %193 = arith.mulf %192, %192 : vector<16x32xf32>
    %cst_58 = arith.constant dense<0.000000e+00> : vector<16xf32>
    %194 = vector.multi_reduction <add>, %193, %cst_58 [1] : vector<16x32xf32> to vector<16xf32>
    %195 = vector.shape_cast %194 : vector<16xf32> to vector<16x1xf32>
    %cst_59 = arith.constant 3.200000e+01 : f32
    %196 = vector.broadcast %cst_59 : f32 to vector<16x1xf32>
    %197 = arith.divf %195, %196 : vector<16x1xf32>
    %198 = vector.broadcast %190 : vector<16x1xf32> to vector<16x32xf32>
    %199 = arith.subf %186, %198 : vector<16x32xf32>
    %cst_60 = arith.constant 9.99999974E-6 : f32
    %200 = vector.broadcast %cst_60 : f32 to vector<16x1xf32>
    %201 = arith.addf %197, %200 : vector<16x1xf32>
    %202 = math.rsqrt %201 : vector<16x1xf32>
    %203 = vector.broadcast %202 : vector<16x1xf32> to vector<16x32xf32>
    %204 = arith.mulf %199, %203 : vector<16x32xf32>
    %205 = vector.shape_cast %144 : vector<32xf32> to vector<1x32xf32>
    %206 = vector.broadcast %205 : vector<1x32xf32> to vector<16x32xf32>
    %207 = arith.mulf %204, %206 : vector<16x32xf32>
    %208 = vector.shape_cast %146 : vector<32xf32> to vector<1x32xf32>
    %209 = vector.broadcast %208 : vector<1x32xf32> to vector<16x32xf32>
    %210 = arith.addf %207, %209 : vector<16x32xf32>
    %211 = arith.truncf %210 : vector<16x32xf32> to vector<16x32xbf16>
    %c1_61 = arith.constant 1 : index
    %c0_62 = arith.constant 0 : index
    %c0_63 = arith.constant 0 : index
    %212 = vector.load %arg6[%c1_61, %c0_62, %c0_63] : memref<2x32x128xbf16, #tpu.memory_space<vmem>>, vector<1x32x128xbf16>
    %213 = vector.shape_cast %212 : vector<1x32x128xbf16> to vector<32x128xbf16>
    %cst_64 = arith.constant dense<0.000000e+00> : vector<16x128xf32>
    %214 = tpu.matmul %211, %213, %cst_64 {dimension_numbers = #tpu.dot_dimension_numbers<[1], [0], [0], [1], [0, 0, 1, 1], [], []>} : vector<16x32xbf16>, vector<32x128xbf16>, vector<16x128xf32> -> vector<16x128xf32>
    %c1_65 = arith.constant 1 : index
    %c0_66 = arith.constant 0 : index
    %215 = vector.load %arg7[%c1_65, %c0_66] : memref<2x128xf32, #tpu.memory_space<vmem>>, vector<1x128xf32>
    %216 = vector.shape_cast %215 : vector<1x128xf32> to vector<128xf32>
    %217 = vector.shape_cast %216 : vector<128xf32> to vector<1x128xf32>
    %218 = vector.broadcast %217 : vector<1x128xf32> to vector<16x128xf32>
    %219 = arith.addf %214, %218 : vector<16x128xf32>
    %cst_67 = arith.constant 5.000000e-01 : f32
    %220 = vector.broadcast %cst_67 : f32 to vector<16x128xf32>
    %221 = arith.mulf %220, %219 : vector<16x128xf32>
    %cst_68 = arith.constant 4.471500e-02 : f32
    %222 = vector.broadcast %cst_68 : f32 to vector<16x128xf32>
    %223 = arith.mulf %222, %219 : vector<16x128xf32>
    %224 = arith.mulf %223, %219 : vector<16x128xf32>
    %225 = arith.mulf %224, %219 : vector<16x128xf32>
    %226 = arith.addf %219, %225 : vector<16x128xf32>
    %cst_69 = arith.constant 0.797884583 : f32
    %227 = vector.broadcast %cst_69 : f32 to vector<16x128xf32>
    %228 = arith.mulf %227, %226 : vector<16x128xf32>
    %229 = math.tanh %228 : vector<16x128xf32>
    %cst_70 = arith.constant 1.000000e+00 : f32
    %230 = vector.broadcast %cst_70 : f32 to vector<16x128xf32>
    %231 = arith.addf %230, %229 : vector<16x128xf32>
    %232 = arith.mulf %221, %231 : vector<16x128xf32>
    %233 = arith.truncf %232 : vector<16x128xf32> to vector<16x128xbf16>
    %c1_71 = arith.constant 1 : index
    %c0_72 = arith.constant 0 : index
    %c0_73 = arith.constant 0 : index
    %234 = vector.load %arg8[%c1_71, %c0_72, %c0_73] : memref<2x128x32xbf16, #tpu.memory_space<vmem>>, vector<1x128x32xbf16>
    %235 = vector.shape_cast %234 : vector<1x128x32xbf16> to vector<128x32xbf16>
    %cst_74 = arith.constant dense<0.000000e+00> : vector<16x32xf32>
    %236 = tpu.matmul %233, %235, %cst_74 {dimension_numbers = #tpu.dot_dimension_numbers<[1], [0], [0], [1], [0, 0, 1, 1], [], []>} : vector<16x128xbf16>, vector<128x32xbf16>, vector<16x32xf32> -> vector<16x32xf32>
    %237 = vector.shape_cast %142 : vector<32xf32> to vector<1x32xf32>
    %238 = vector.broadcast %237 : vector<1x32xf32> to vector<16x32xf32>
    %239 = arith.addf %236, %238 : vector<16x32xf32>
    %240 = arith.addf %210, %239 : vector<16x32xf32>
    %cst_75 = arith.constant dense<0.000000e+00> : vector<16xf32>
    %241 = vector.multi_reduction <add>, %240, %cst_75 [1] : vector<16x32xf32> to vector<16xf32>
    %242 = vector.shape_cast %241 : vector<16xf32> to vector<16x1xf32>
    %cst_76 = arith.constant 3.200000e+01 : f32
    %243 = vector.broadcast %cst_76 : f32 to vector<16x1xf32>
    %244 = arith.divf %242, %243 : vector<16x1xf32>
    %245 = vector.broadcast %244 : vector<16x1xf32> to vector<16x32xf32>
    %246 = arith.subf %240, %245 : vector<16x32xf32>
    %247 = arith.mulf %246, %246 : vector<16x32xf32>
    %cst_77 = arith.constant dense<0.000000e+00> : vector<16xf32>
    %248 = vector.multi_reduction <add>, %247, %cst_77 [1] : vector<16x32xf32> to vector<16xf32>
    %249 = vector.shape_cast %248 : vector<16xf32> to vector<16x1xf32>
    %cst_78 = arith.constant 3.200000e+01 : f32
    %250 = vector.broadcast %cst_78 : f32 to vector<16x1xf32>
    %251 = arith.divf %249, %250 : vector<16x1xf32>
    %252 = vector.broadcast %244 : vector<16x1xf32> to vector<16x32xf32>
    %253 = arith.subf %240, %252 : vector<16x32xf32>
    %cst_79 = arith.constant 9.99999974E-6 : f32
    %254 = vector.broadcast %cst_79 : f32 to vector<16x1xf32>
    %255 = arith.addf %251, %254 : vector<16x1xf32>
    %256 = math.rsqrt %255 : vector<16x1xf32>
    %257 = vector.broadcast %256 : vector<16x1xf32> to vector<16x32xf32>
    %258 = arith.mulf %253, %257 : vector<16x32xf32>
    %259 = vector.shape_cast %148 : vector<32xf32> to vector<1x32xf32>
    %260 = vector.broadcast %259 : vector<1x32xf32> to vector<16x32xf32>
    %261 = arith.mulf %258, %260 : vector<16x32xf32>
    %262 = vector.shape_cast %150 : vector<32xf32> to vector<1x32xf32>
    %263 = vector.broadcast %262 : vector<1x32xf32> to vector<16x32xf32>
    %264 = arith.addf %261, %263 : vector<16x32xf32>
    %c0_80 = arith.constant 0 : index
    %c0_81 = arith.constant 0 : index
    %265 = vector.load %arg10[%c0_80, %c0_81] : memref<2x32xf32, #tpu.memory_space<vmem>>, vector<1x32xf32>
    %266 = vector.shape_cast %265 : vector<1x32xf32> to vector<32xf32>
    %c1_82 = arith.constant 1 : index
    %c0_83 = arith.constant 0 : index
    %267 = vector.load %arg10[%c1_82, %c0_83] : memref<2x32xf32, #tpu.memory_space<vmem>>, vector<1x32xf32>
    %268 = vector.shape_cast %267 : vector<1x32xf32> to vector<32xf32>
    %cst_84 = arith.constant dense<0.000000e+00> : vector<16xf32>
    %269 = vector.multi_reduction <add>, %264, %cst_84 [1] : vector<16x32xf32> to vector<16xf32>
    %270 = vector.shape_cast %269 : vector<16xf32> to vector<16x1xf32>
    %cst_85 = arith.constant 3.200000e+01 : f32
    %271 = vector.broadcast %cst_85 : f32 to vector<16x1xf32>
    %272 = arith.divf %270, %271 : vector<16x1xf32>
    %273 = vector.broadcast %272 : vector<16x1xf32> to vector<16x32xf32>
    %274 = arith.subf %264, %273 : vector<16x32xf32>
    %275 = arith.mulf %274, %274 : vector<16x32xf32>
    %cst_86 = arith.constant dense<0.000000e+00> : vector<16xf32>
    %276 = vector.multi_reduction <add>, %275, %cst_86 [1] : vector<16x32xf32> to vector<16xf32>
    %277 = vector.shape_cast %276 : vector<16xf32> to vector<16x1xf32>
    %cst_87 = arith.constant 3.200000e+01 : f32
    %278 = vector.broadcast %cst_87 : f32 to vector<16x1xf32>
    %279 = arith.divf %277, %278 : vector<16x1xf32>
    %280 = vector.broadcast %272 : vector<16x1xf32> to vector<16x32xf32>
    %281 = arith.subf %264, %280 : vector<16x32xf32>
    %cst_88 = arith.constant 9.99999974E-6 : f32
    %282 = vector.broadcast %cst_88 : f32 to vector<16x1xf32>
    %283 = arith.addf %279, %282 : vector<16x1xf32>
    %284 = math.rsqrt %283 : vector<16x1xf32>
    %285 = vector.broadcast %284 : vector<16x1xf32> to vector<16x32xf32>
    %286 = arith.mulf %281, %285 : vector<16x32xf32>
    %287 = vector.shape_cast %266 : vector<32xf32> to vector<1x32xf32>
    %288 = vector.broadcast %287 : vector<1x32xf32> to vector<16x32xf32>
    %289 = arith.mulf %286, %288 : vector<16x32xf32>
    %290 = vector.shape_cast %268 : vector<32xf32> to vector<1x32xf32>
    %291 = vector.broadcast %290 : vector<1x32xf32> to vector<16x32xf32>
    %292 = arith.addf %289, %291 : vector<16x32xf32>
    %c0_89 = arith.constant 0 : index
    %c0_90 = arith.constant 0 : index
    %293 = vector.load %arg11[%c0_89, %c0_90] : memref<16x32xf32, #tpu.memory_space<vmem>>, vector<16x32xf32>
    tpu.vector_store %arg11[%c0_89, %c0_90], %292 {strides = array<i32>} : memref<16x32xf32, #tpu.memory_space<vmem>>, vector<16x32xf32>,
    return
  }
}

</mosaic_0001>

<llo_original>
// kernel: padding_aware_encoder.1
$region0: #{padding_aware_encoder.1}
  #allocation0 [shape = 'u32[]', space=smem, size = 0x4, offset = 0x4, fixed_abs, tag = 'smem constant byte address 0x4 - core index']
  #allocation1 [shape = 'u32[72,128]{1,0:T(1,128)}', space=vmem, size = 0x9000, scoped, tag = 'internal scratch']
  %s0 = inlined_call_operand.vmem [shape: f32[16,64], index: 0, kind: input, shape index: {}]
  %s1 = inlined_call_operand.vmem [shape: f32[16,16], index: 1, kind: input, shape index: {}]
  %s2 = inlined_call_operand.vmem [shape: bf16[64,32], index: 2, kind: input, shape index: {}]
  %s3 = inlined_call_operand.vmem [shape: f32[16,32], index: 3, kind: input, shape index: {}]
  %s4 = inlined_call_operand.vmem [shape: bf16[2,32,192], index: 4, kind: input, shape index: {}]
  %s5 = inlined_call_operand.vmem [shape: f32[2,192], index: 5, kind: input, shape index: {}]
  %s6 = inlined_call_operand.vmem [shape: bf16[2,32,128], index: 6, kind: input, shape index: {}]
  %s7 = inlined_call_operand.vmem [shape: f32[2,128], index: 7, kind: input, shape index: {}]
  %s8 = inlined_call_operand.vmem [shape: bf16[2,128,32], index: 8, kind: input, shape index: {}]
  %s9 = inlined_call_operand.vmem [shape: f32[2,6,32], index: 9, kind: input, shape index: {}]
  %s10 = inlined_call_operand.vmem [shape: f32[2,32], index: 10, kind: input, shape index: {}]
  %s11 = inlined_call_operand.hbm [shape: f32[16,32], index: 11, kind: output, shape index: {}]
  %s12 = sld [smem:[#allocation0]]
  $region54: #{padding_aware_encoder.1} parent=0
    _
  %s14 = ssub.s32 1, %s12
  %s15 = scalar_select 0, %s14, %s12
  $region1: #{padding_aware_encoder.1} parent=0
    #allocation2 [shape = 'u8[8192]{0}', space=vmem, size = 0x2000, scoped, tag = 'output window, operand 0, single buffered']
    #allocation3 [shape = 's32[1]{0}', space=sflag, size = 0x4, scoped, tag = 'scoped memory for padding_aware_encoder.1']
    %16 = vsyncpa [#allocation3], 0
    // Predicated region
    $region2: #{padding_aware_encoder.1} parent=1 // pred_check
      _
    $region3: #{padding_aware_encoder.1} parent=1 // pred_check_branch
      %18 = sbr.rel (0) target = $region5
    $region4: #{padding_aware_encoder.1} parent=1 // pred_region
      _
    $region5: #{padding_aware_encoder.1} parent=1 // pred_fallthru
      _
    // Predicated region
    $region6: #{padding_aware_encoder.1} parent=1 // pred_check
      _
    $region7: #{padding_aware_encoder.1} parent=1 // pred_check_branch
      %20 = sbr.rel (0) target = $region9
    $region8: #{padding_aware_encoder.1} parent=1 // pred_region
      _
    $region9: #{padding_aware_encoder.1} parent=1 // pred_fallthru
      _
    // Predicated region
    $region10: #{padding_aware_encoder.1} parent=1 // pred_check
      _
    $region11: #{padding_aware_encoder.1} parent=1 // pred_check_branch
      %22 = sbr.rel (0) target = $region13
    $region12: #{padding_aware_encoder.1} parent=1 // pred_region
      _
    $region13: #{padding_aware_encoder.1} parent=1 // pred_fallthru
      _
    // Predicated region
    $region14: #{padding_aware_encoder.1} parent=1 // pred_check
      _
    $region15: #{padding_aware_encoder.1} parent=1 // pred_check_branch
      %24 = sbr.rel (0) target = $region17
    $region16: #{padding_aware_encoder.1} parent=1 // pred_region
      _
    $region17: #{padding_aware_encoder.1} parent=1 // pred_fallthru
      _
    // Predicated region
    $region18: #{padding_aware_encoder.1} parent=1 // pred_check
      _
    $region19: #{padding_aware_encoder.1} parent=1 // pred_check_branch
      %26 = sbr.rel (0) target = $region21
    $region20: #{padding_aware_encoder.1} parent=1 // pred_region
      _
    $region21: #{padding_aware_encoder.1} parent=1 // pred_fallthru
      _
    // Predicated region
    $region22: #{padding_aware_encoder.1} parent=1 // pred_check
      _
    $region23: #{padding_aware_encoder.1} parent=1 // pred_check_branch
      %28 = sbr.rel (0) target = $region25
    $region24: #{padding_aware_encoder.1} parent=1 // pred_region
      _
    $region25: #{padding_aware_encoder.1} parent=1 // pred_fallthru
      _
    // Predicated region
    $region26: #{padding_aware_encoder.1} parent=1 // pred_check
      _
    $region27: #{padding_aware_encoder.1} parent=1 // pred_check_branch
      %30 = sbr.rel (0) target = $region29
    $region28: #{padding_aware_encoder.1} parent=1 // pred_region
      _
    $region29: #{padding_aware_encoder.1} parent=1 // pred_fallthru
      _
    // Predicated region
    $region30: #{padding_aware_encoder.1} parent=1 // pred_check
      _
    $region31: #{padding_aware_encoder.1} parent=1 // pred_check_branch
      %32 = sbr.rel (0) target = $region33
    $region32: #{padding_aware_encoder.1} parent=1 // pred_region
      _
    $region33: #{padding_aware_encoder.1} parent=1 // pred_fallthru
      _
    // Predicated region
    $region34: #{padding_aware_encoder.1} parent=1 // pred_check
      _
    $region35: #{padding_aware_encoder.1} parent=1 // pred_check_branch
      %34 = sbr.rel (0) target = $region37
    $region36: #{padding_aware_encoder.1} parent=1 // pred_region
      _
    $region37: #{padding_aware_encoder.1} parent=1 // pred_fallthru
      _
    // Predicated region
    $region38: #{padding_aware_encoder.1} parent=1 // pred_check
      _
    $region39: #{padding_aware_encoder.1} parent=1 // pred_check_branch
      %36 = sbr.rel (0) target = $region41
    $region40: #{padding_aware_encoder.1} parent=1 // pred_region
      _
    $region41: #{padding_aware_encoder.1} parent=1 // pred_fallthru
      _
    // Predicated region
    $region42: #{padding_aware_encoder.1} parent=1 // pred_check
      _
    $region43: #{padding_aware_encoder.1} parent=1 // pred_check_branch
      %38 = sbr.rel (0) target = $region45
    $region44: #{padding_aware_encoder.1} parent=1 // pred_region
      _
    $region45: #{padding_aware_encoder.1} parent=1 // pred_fallthru
      _
    %v40 = vld [vmem:[%s1] sm:$0xff]
    %v41 = vld [vmem:[%s1 + $0x8] sm:$0xff]
    %v42 = vld [vmem:[%s0] sm:$0xff]
    %v43 = vld [vmem:[%s0 + $0x8] sm:$0xff]
    %v44 = vpack.c.bf16 %v43, %v42
    %v45 = vld [vmem:[%s2] sm:$0xf]
    %v46 = vld [vmem:[%s2 + $0x4] sm:$0xf]
    %v47 = vld [vmem:[%s2 + $0x8] sm:$0xf]
    %v48 = vld [vmem:[%s2 + $0xc] sm:$0xf]
    %v49 = vld [vmem:[%s2 + $0x10] sm:$0xf]
    %v50 = vld [vmem:[%s2 + $0x14] sm:$0xf]
    %v51 = vld [vmem:[%s2 + $0x18] sm:$0xf]
    %v52 = vld [vmem:[%s2 + $0x1c] sm:$0xf]
    %v53 = vld [vmem:[%s3] sm:$0xff]
    %v54 = vld [vmem:[%s3 + $0x8] sm:$0xff]
    %v63 = vunpack.c.l.b16 %v45
    %v64 = vunpack.c.l.b16 %v46
    %v65 = vunpack.c.l.b16 %v47
    %v66 = vunpack.c.l.b16 %v48
    %v67 = vunpack.c.l.b16 %v49
    %v68 = vunpack.c.l.b16 %v50
    %v69 = vunpack.c.l.b16 %v51
    %v70 = vunpack.c.l.b16 %v52
    %v71 = vpack.c.b16 %v64, %v63
    %v72 = vpack.c.b16 %v66, %v65
    %v73 = vpack.c.b16 %v68, %v67
    %v74 = vpack.c.b16 %v70, %v69
    %vm79 = vcmask 523264
    %v81 = vsel %vm79, %v44, 0
    %83 = vmatpush.bf16.msra.mxu0 0
    %84 = vmatpush.bf16.msra.mxu0 0
    %85 = vmatpush.bf16.msra.mxu0 0
    %86 = vmatpush.bf16.msra.mxu0 0
    %87 = vmatpush.bf16.msra.mxu0 %v74
    %88 = vmatpush.bf16.msra.mxu0 %v73
    %89 = vmatpush.bf16.msra.mxu0 %v72
    %90 = vmatpush.bf16.msra.mxu0 %v71
    %91 = vmatmul.bf16.gmra.mxu0 %v81
    %v92 = vpop.f32.mrf.mxu0
    %v93 = vadd.f32 %v53, %v92
    %v94 = vpop.f32.mrf.mxu0
    %v95 = vadd.f32 %v54, %v94
    %96 = vdwg.mxu0
    %v97 = vld [vmem:[%s9] sm:$0x3f]
    %v98 = vpack.c.bf16 %v95, %v93
    %v99 = vld [vmem:[%s4] sm:$0xff]
    %v100 = vld [vmem:[%s4 + $0x8] sm:$0xff]
    %v101 = vld [vmem:[%s4 + $0x10] sm:$0xff]
    %v102 = vld [vmem:[%s4 + $0x18] sm:$0xff]
    %v103 = vld [vmem:[%s5] ss:$2 sm:$0x3]
    %v105 = vperm.slane %v103, 0
    %v106 = vperm.slane %v103, 1
    %v113 = vunpack.c.l.b16 %v99
    %v114 = vunpack.c.h.b16 %v99
    %v115 = vunpack.c.l.b16 %v100
    %v116 = vunpack.c.h.b16 %v100
    %v117 = vunpack.c.l.b16 %v101
    %v118 = vunpack.c.h.b16 %v101
    %v119 = vunpack.c.l.b16 %v102
    %v120 = vunpack.c.h.b16 %v102
    %v121 = vpack.c.b16 %v115, %v113
    %v122 = vpack.c.b16 %v116, %v114
    %v123 = vpack.c.b16 %v119, %v117
    %v124 = vpack.c.b16 %v120, %v118
    %vm129 = vcmask 261120
    %v131 = vsel %vm129, %v98, 0
    %133 = vmatpush.bf16.msra.mxu0 0
    %134 = vmatpush.bf16.msra.mxu0 0
    %135 = vmatpush.bf16.msra.mxu0 0
    %136 = vmatpush.bf16.msra.mxu0 0
    %137 = vmatpush.bf16.msra.mxu0 0
    %138 = vmatpush.bf16.msra.mxu0 0
    %139 = vmatpush.bf16.msra.mxu0 %v123
    %140 = vmatpush.bf16.msra.mxu0 %v121
    %141 = vmatmul.bf16.gmra.mxu0 %v131
    %v142 = vpop.f32.mrf.mxu0
    %v143 = vadd.f32 %v105, %v142
    %v144 = vpop.f32.mrf.mxu0
    %v145 = vadd.f32 %v105, %v144
    %146 = vdwg.mxu0
    %147 = vmatpush.bf16.msra.mxu0 0
    %148 = vmatpush.bf16.msra.mxu0 0
    %149 = vmatpush.bf16.msra.mxu0 0
    %150 = vmatpush.bf16.msra.mxu0 0
    %151 = vmatpush.bf16.msra.mxu0 0
    %152 = vmatpush.bf16.msra.mxu0 0
    %153 = vmatpush.bf16.msra.mxu0 %v124
    %154 = vmatpush.bf16.msra.mxu0 %v122
    %155 = vmatmul.bf16.gmra.mxu0 %v131
    %v156 = vpop.f32.mrf.mxu0
    %v157 = vadd.f32 %v106, %v156
    %v158 = vpop.f32.mrf.mxu0
    %v159 = vadd.f32 %v106, %v158
    %160 = vdwg.mxu0
    %163 = vrot.lane.b32.xlu0 %v143, 120
    %v164 = vpop.permute.xlu0 %163
    %165 = vrot.lane.b32.xlu0 %v145, 120
    %v166 = vpop.permute.xlu0 %165
    %169 = vrot.lane.b32.xlu0 %v143, 112
    %v170 = vpop.permute.xlu0 %169
    %171 = vrot.lane.b32.xlu0 %v145, 112
    %v172 = vpop.permute.xlu0 %171
    %175 = vrot.lane.b32.xlu0 %v143, 104
    %v176 = vpop.permute.xlu0 %175
    %177 = vrot.lane.b32.xlu0 %v145, 104
    %v178 = vpop.permute.xlu0 %177
    %v181 = vrot.slane %v170, 4
    %vm182 = vcmask 1047556
    %v183 = vsel %vm182, %v181, %v143
    %v184 = vrot.slane %v143, 4
    %v185 = vsel %vm182, %v170, %v184
    %v187 = vunpack.c.l.s4 1983009808
    %v188 = vunpack.c.0.s8 %v187
    %v189 = vperm.slane %v183, %v188
    %v191 = vunpack.c.l.s4 1983009808
    %v192 = vunpack.c.0.s8 %v191
    %v193 = vperm.slane %v185, %v192
    %v194 = vrot.slane %v176, 4
    %v195 = vsel %vm182, %v194, %v164
    %v196 = vrot.slane %v164, 4
    %v197 = vsel %vm182, %v176, %v196
    %v199 = vunpack.c.l.s4 1983009808
    %v200 = vunpack.c.0.s8 %v199
    %v201 = vperm.slane %v195, %v200
    %v203 = vunpack.c.l.s4 1983009808
    %v204 = vunpack.c.0.s8 %v203
    %v205 = vperm.slane %v197, %v204
    %v206 = vrot.slane %v201, 4
    %v207 = vsel %vm182, %v206, %v189
    %v208 = vrot.slane %v189, 4
    %v209 = vsel %vm182, %v201, %v208
    %v211 = vunpack.c.l.s4 1934713408
    %v212 = vunpack.c.0.s8 %v211
    %v213 = vperm.slane %v207, %v212
    %v215 = vunpack.c.l.s4 1934713408
    %v216 = vunpack.c.0.s8 %v215
    %v217 = vperm.slane %v209, %v216
    %v218 = vrot.slane %v205, 4
    %v219 = vsel %vm182, %v218, %v193
    %v220 = vrot.slane %v193, 4
    %v221 = vsel %vm182, %v205, %v220
    %v223 = vunpack.c.l.s4 1934713408
    %v224 = vunpack.c.0.s8 %v223
    %v225 = vperm.slane %v219, %v224
    %v227 = vunpack.c.l.s4 1934713408
    %v228 = vunpack.c.0.s8 %v227
    %v229 = vperm.slane %v221, %v228
    %v230 = vrot.slane %v213, 4
    %v231 = vsel %vm182, 0.0, %v230
    %v232 = vrot.slane %v217, 4
    %v233 = vsel %vm182, 0.0, %v232
    %v234 = vrot.slane %v225, 4
    %v235 = vsel %vm182, 0.0, %v234
    %v236 = vrot.slane %v229, 4
    %v237 = vsel %vm182, 0.0, %v236
    %v238 = vrot.slane %v172, 4
    %v239 = vsel %vm182, %v238, %v145
    %v240 = vrot.slane %v145, 4
    %v241 = vsel %vm182, %v172, %v240
    %v243 = vunpack.c.l.s4 1983009808
    %v244 = vunpack.c.0.s8 %v243
    %v245 = vperm.slane %v239, %v244
    %v247 = vunpack.c.l.s4 1983009808
    %v248 = vunpack.c.0.s8 %v247
    %v249 = vperm.slane %v241, %v248
    %v250 = vrot.slane %v178, 4
    %v251 = vsel %vm182, %v250, %v166
    %v252 = vrot.slane %v166, 4
    %v253 = vsel %vm182, %v178, %v252
    %v255 = vunpack.c.l.s4 1983009808
    %v256 = vunpack.c.0.s8 %v255
    %v257 = vperm.slane %v251, %v256
    %v259 = vunpack.c.l.s4 1983009808
    %v260 = vunpack.c.0.s8 %v259
    %v261 = vperm.slane %v253, %v260
    %v262 = vrot.slane %v257, 4
    %v263 = vsel %vm182, %v262, %v245
    %v264 = vrot.slane %v245, 4
    %v265 = vsel %vm182, %v257, %v264
    %v267 = vunpack.c.l.s4 1934713408
    %v268 = vunpack.c.0.s8 %v267
    %v269 = vperm.slane %v263, %v268
    %v271 = vunpack.c.l.s4 1934713408
    %v272 = vunpack.c.0.s8 %v271
    %v273 = vperm.slane %v265, %v272
    %v274 = vrot.slane %v261, 4
    %v275 = vsel %vm182, %v274, %v249
    %v276 = vrot.slane %v249, 4
    %v277 = vsel %vm182, %v261, %v276
    %v279 = vunpack.c.l.s4 1934713408
    %v280 = vunpack.c.0.s8 %v279
    %v281 = vperm.slane %v275, %v280
    %v283 = vunpack.c.l.s4 1934713408
    %v284 = vunpack.c.0.s8 %v283
    %v285 = vperm.slane %v277, %v284
    %v286 = vrot.slane %v269, 4
    %v287 = vsel %vm182, 0.0, %v286
    %v288 = vrot.slane %v273, 4
    %v289 = vsel %vm182, 0.0, %v288
    %v290 = vrot.slane %v281, 4
    %v291 = vsel %vm182, 0.0, %v290
    %v292 = vrot.slane %v285, 4
    %v293 = vsel %vm182, 0.0, %v292
    %v294 = vsel %vm182, %v232, %v213
    %v296 = vunpack.c.l.s4 1983009808
    %v297 = vunpack.c.0.s8 %v296
    %v298 = vperm.slane %v294, %v297
    %v299 = vrot.slane %v233, 4
    %v300 = vsel %vm182, %v299, %v231
    %v302 = vunpack.c.l.s4 1983009808
    %v303 = vunpack.c.0.s8 %v302
    %v304 = vperm.slane %v300, %v303
    %v305 = vsel %vm182, %v236, %v225
    %v307 = vunpack.c.l.s4 1983009808
    %v308 = vunpack.c.0.s8 %v307
    %v309 = vperm.slane %v305, %v308
    %v310 = vrot.slane %v237, 4
    %v311 = vsel %vm182, %v310, %v235
    %v313 = vunpack.c.l.s4 1983009808
    %v314 = vunpack.c.0.s8 %v313
    %v315 = vperm.slane %v311, %v314
    %v316 = vrot.slane %v304, 4
    %v317 = vsel %vm182, %v316, %v298
    %v318 = vrot.slane %v298, 4
    %v319 = vsel %vm182, %v304, %v318
    %v321 = vunpack.c.l.s4 1934713408
    %v322 = vunpack.c.0.s8 %v321
    %v323 = vperm.slane %v317, %v322
    %v325 = vunpack.c.l.s4 1934713408
    %v326 = vunpack.c.0.s8 %v325
    %v327 = vperm.slane %v319, %v326
    %v328 = vrot.slane %v315, 4
    %v329 = vsel %vm182, %v328, %v309
    %v330 = vrot.slane %v309, 4
    %v331 = vsel %vm182, %v315, %v330
    %v333 = vunpack.c.l.s4 1934713408
    %v334 = vunpack.c.0.s8 %v333
    %v335 = vperm.slane %v329, %v334
    %v337 = vunpack.c.l.s4 1934713408
    %v338 = vunpack.c.0.s8 %v337
    %v339 = vperm.slane %v331, %v338
    %v340 = vrot.slane %v335, 4
    %v341 = vsel %vm182, %v340, %v323
    %v342 = vrot.slane %v323, 4
    %v343 = vsel %vm182, %v335, %v342
    %v344 = vrot.slane %v339, 4
    %v345 = vsel %vm182, %v344, %v327
    %v346 = vrot.slane %v327, 4
    %v347 = vsel %vm182, %v339, %v346
    %v348 = vsel %vm182, %v288, %v269
    %v350 = vunpack.c.l.s4 1983009808
    %v351 = vunpack.c.0.s8 %v350
    %v352 = vperm.slane %v348, %v351
    %v353 = vrot.slane %v289, 4
    %v354 = vsel %vm182, %v353, %v287
    %v356 = vunpack.c.l.s4 1983009808
    %v357 = vunpack.c.0.s8 %v356
    %v358 = vperm.slane %v354, %v357
    %v359 = vsel %vm182, %v292, %v281
    %v361 = vunpack.c.l.s4 1983009808
    %v362 = vunpack.c.0.s8 %v361
    %v363 = vperm.slane %v359, %v362
    %v364 = vrot.slane %v293, 4
    %v365 = vsel %vm182, %v364, %v291
    %v367 = vunpack.c.l.s4 1983009808
    %v368 = vunpack.c.0.s8 %v367
    %v369 = vperm.slane %v365, %v368
    %v370 = vrot.slane %v358, 4
    %v371 = vsel %vm182, %v370, %v352
    %v372 = vrot.slane %v352, 4
    %v373 = vsel %vm182, %v358, %v372
    %v375 = vunpack.c.l.s4 1934713408
    %v376 = vunpack.c.0.s8 %v375
    %v377 = vperm.slane %v371, %v376
    %v379 = vunpack.c.l.s4 1934713408
    %v380 = vunpack.c.0.s8 %v379
    %v381 = vperm.slane %v373, %v380
    %v382 = vrot.slane %v369, 4
    %v383 = vsel %vm182, %v382, %v363
    %v384 = vrot.slane %v363, 4
    %v385 = vsel %vm182, %v369, %v384
    %v387 = vunpack.c.l.s4 1934713408
    %v388 = vunpack.c.0.s8 %v387
    %v389 = vperm.slane %v383, %v388
    %v391 = vunpack.c.l.s4 1934713408
    %v392 = vunpack.c.0.s8 %v391
    %v393 = vperm.slane %v385, %v392
    %v394 = vrot.slane %v389, 4
    %v395 = vsel %vm182, %v394, %v377
    %v396 = vrot.slane %v377, 4
    %v397 = vsel %vm182, %v389, %v396
    %v398 = vrot.slane %v393, 4
    %v399 = vsel %vm182, %v398, %v381
    %v400 = vrot.slane %v381, 4
    %v401 = vsel %vm182, %v393, %v400
    %v402 = vpack.c.bf16 %v341, %v341
    %v403 = vpack.c.bf16 %v395, %v395
    %v404 = vpack.c.bf16 %v343, %v343
    %v405 = vpack.c.bf16 %v397, %v397
    %v406 = vpack.c.bf16 %v345, %v345
    %v407 = vpack.c.bf16 %v399, %v399
    %v408 = vpack.c.bf16 %v347, %v347
    %v409 = vpack.c.bf16 %v401, %v401
    %410 = vrot.lane.b32.xlu0 %v143, 96
    %v411 = vpop.permute.xlu0 %410
    %412 = vrot.lane.b32.xlu0 %v145, 96
    %v413 = vpop.permute.xlu0 %412
    %414 = vrot.lane.b32.xlu0 %v164, 96
    %v415 = vpop.permute.xlu0 %414
    %416 = vrot.lane.b32.xlu0 %v166, 96
    %v417 = vpop.permute.xlu0 %416
    %418 = vrot.lane.b32.xlu0 %v170, 96
    %v419 = vpop.permute.xlu0 %418
    %420 = vrot.lane.b32.xlu0 %v172, 96
    %v421 = vpop.permute.xlu0 %420
    %422 = vrot.lane.b32.xlu0 %v176, 96
    %v423 = vpop.permute.xlu0 %422
    %424 = vrot.lane.b32.xlu0 %v178, 96
    %v425 = vpop.permute.xlu0 %424
    %v434 = vrot.slane %v419, 4
    %v435 = vsel %vm182, %v434, %v411
    %v436 = vrot.slane %v411, 4
    %v437 = vsel %vm182, %v419, %v436
    %v439 = vunpack.c.l.s4 1983009808
    %v440 = vunpack.c.0.s8 %v439
    %v441 = vperm.slane %v435, %v440
    %v443 = vunpack.c.l.s4 1983009808
    %v444 = vunpack.c.0.s8 %v443
    %v445 = vperm.slane %v437, %v444
    %v446 = vrot.slane %v423, 4
    %v447 = vsel %vm182, %v446, %v415
    %v448 = vrot.slane %v415, 4
    %v449 = vsel %vm182, %v423, %v448
    %v451 = vunpack.c.l.s4 1983009808
    %v452 = vunpack.c.0.s8 %v451
    %v453 = vperm.slane %v447, %v452
    %v455 = vunpack.c.l.s4 1983009808
    %v456 = vunpack.c.0.s8 %v455
    %v457 = vperm.slane %v449, %v456
    %v458 = vrot.slane %v453, 4
    %v459 = vsel %vm182, %v458, %v441
    %v460 = vrot.slane %v441, 4
    %v461 = vsel %vm182, %v453, %v460
    %v463 = vunpack.c.l.s4 1934713408
    %v464 = vunpack.c.0.s8 %v463
    %v465 = vperm.slane %v459, %v464
    %v467 = vunpack.c.l.s4 1934713408
    %v468 = vunpack.c.0.s8 %v467
    %v469 = vperm.slane %v461, %v468
    %v470 = vrot.slane %v457, 4
    %v471 = vsel %vm182, %v470, %v445
    %v472 = vrot.slane %v445, 4
    %v473 = vsel %vm182, %v457, %v472
    %v475 = vunpack.c.l.s4 1934713408
    %v476 = vunpack.c.0.s8 %v475
    %v477 = vperm.slane %v471, %v476
    %v479 = vunpack.c.l.s4 1934713408
    %v480 = vunpack.c.0.s8 %v479
    %v481 = vperm.slane %v473, %v480
    %v482 = vrot.slane %v465, 4
    %v483 = vsel %vm182, 0.0, %v482
    %v484 = vrot.slane %v469, 4
    %v485 = vsel %vm182, 0.0, %v484
    %v486 = vrot.slane %v477, 4
    %v487 = vsel %vm182, 0.0, %v486
    %v488 = vrot.slane %v481, 4
    %v489 = vsel %vm182, 0.0, %v488
    %v490 = vrot.slane %v421, 4
    %v491 = vsel %vm182, %v490, %v413
    %v492 = vrot.slane %v413, 4
    %v493 = vsel %vm182, %v421, %v492
    %v495 = vunpack.c.l.s4 1983009808
    %v496 = vunpack.c.0.s8 %v495
    %v497 = vperm.slane %v491, %v496
    %v499 = vunpack.c.l.s4 1983009808
    %v500 = vunpack.c.0.s8 %v499
    %v501 = vperm.slane %v493, %v500
    %v502 = vrot.slane %v425, 4
    %v503 = vsel %vm182, %v502, %v417
    %v504 = vrot.slane %v417, 4
    %v505 = vsel %vm182, %v425, %v504
    %v507 = vunpack.c.l.s4 1983009808
    %v508 = vunpack.c.0.s8 %v507
    %v509 = vperm.slane %v503, %v508
    %v511 = vunpack.c.l.s4 1983009808
    %v512 = vunpack.c.0.s8 %v511
    %v513 = vperm.slane %v505, %v512
    %v514 = vrot.slane %v509, 4
    %v515 = vsel %vm182, %v514, %v497
    %v516 = vrot.slane %v497, 4
    %v517 = vsel %vm182, %v509, %v516
    %v519 = vunpack.c.l.s4 1934713408
    %v520 = vunpack.c.0.s8 %v519
    %v521 = vperm.slane %v515, %v520
    %v523 = vunpack.c.l.s4 1934713408
    %v524 = vunpack.c.0.s8 %v523
    %v525 = vperm.slane %v517, %v524
    %v526 = vrot.slane %v513, 4
    %v527 = vsel %vm182, %v526, %v501
    %v528 = vrot.slane %v501, 4
    %v529 = vsel %vm182, %v513, %v528
    %v531 = vunpack.c.l.s4 1934713408
    %v532 = vunpack.c.0.s8 %v531
    %v533 = vperm.slane %v527, %v532
    %v535 = vunpack.c.l.s4 1934713408
    %v536 = vunpack.c.0.s8 %v535
    %v537 = vperm.slane %v529, %v536
    %v538 = vrot.slane %v521, 4
    %v539 = vsel %vm182, 0.0, %v538
    %v540 = vrot.slane %v525, 4
    %v541 = vsel %vm182, 0.0, %v540
    %v542 = vrot.slane %v533, 4
    %v543 = vsel %vm182, 0.0, %v542
    %v544 = vrot.slane %v537, 4
    %v545 = vsel %vm182, 0.0, %v544
    %v546 = vsel %vm182, %v484, %v465
    %v548 = vunpack.c.l.s4 1983009808
    %v549 = vunpack.c.0.s8 %v548
    %v550 = vperm.slane %v546, %v549
    %v551 = vrot.slane %v485, 4
    %v552 = vsel %vm182, %v551, %v483
    %v554 = vunpack.c.l.s4 1983009808
    %v555 = vunpack.c.0.s8 %v554
    %v556 = vperm.slane %v552, %v555
    %v557 = vsel %vm182, %v488, %v477
    %v559 = vunpack.c.l.s4 1983009808
    %v560 = vunpack.c.0.s8 %v559
    %v561 = vperm.slane %v557, %v560
    %v562 = vrot.slane %v489, 4
    %v563 = vsel %vm182, %v562, %v487
    %v565 = vunpack.c.l.s4 1983009808
    %v566 = vunpack.c.0.s8 %v565
    %v567 = vperm.slane %v563, %v566
    %v568 = vrot.slane %v556, 4
    %v569 = vsel %vm182, %v568, %v550
    %v570 = vrot.slane %v550, 4
    %v571 = vsel %vm182, %v556, %v570
    %v573 = vunpack.c.l.s4 1934713408
    %v574 = vunpack.c.0.s8 %v573
    %v575 = vperm.slane %v569, %v574
    %v577 = vunpack.c.l.s4 1934713408
    %v578 = vunpack.c.0.s8 %v577
    %v579 = vperm.slane %v571, %v578
    %v580 = vrot.slane %v567, 4
    %v581 = vsel %vm182, %v580, %v561
    %v582 = vrot.slane %v561, 4
    %v583 = vsel %vm182, %v567, %v582
    %v585 = vunpack.c.l.s4 1934713408
    %v586 = vunpack.c.0.s8 %v585
    %v587 = vperm.slane %v581, %v586
    %v589 = vunpack.c.l.s4 1934713408
    %v590 = vunpack.c.0.s8 %v589
    %v591 = vperm.slane %v583, %v590
    %v592 = vrot.slane %v587, 4
    %v593 = vsel %vm182, %v592, %v575
    %v594 = vrot.slane %v575, 4
    %v595 = vsel %vm182, %v587, %v594
    %v596 = vrot.slane %v591, 4
    %v597 = vsel %vm182, %v596, %v579
    %v598 = vrot.slane %v579, 4
    %v599 = vsel %vm182, %v591, %v598
    %v600 = vsel %vm182, %v540, %v521
    %v602 = vunpack.c.l.s4 1983009808
    %v603 = vunpack.c.0.s8 %v602
    %v604 = vperm.slane %v600, %v603
    %v605 = vrot.slane %v541, 4
    %v606 = vsel %vm182, %v605, %v539
    %v608 = vunpack.c.l.s4 1983009808
    %v609 = vunpack.c.0.s8 %v608
    %v610 = vperm.slane %v606, %v609
    %v611 = vsel %vm182, %v544, %v533
    %v613 = vunpack.c.l.s4 1983009808
    %v614 = vunpack.c.0.s8 %v613
    %v615 = vperm.slane %v611, %v614
    %v616 = vrot.slane %v545, 4
    %v617 = vsel %vm182, %v616, %v543
    %v619 = vunpack.c.l.s4 1983009808
    %v620 = vunpack.c.0.s8 %v619
    %v621 = vperm.slane %v617, %v620
    %v622 = vrot.slane %v610, 4
    %v623 = vsel %vm182, %v622, %v604
    %v624 = vrot.slane %v604, 4
    %v625 = vsel %vm182, %v610, %v624
    %v627 = vunpack.c.l.s4 1934713408
    %v628 = vunpack.c.0.s8 %v627
    %v629 = vperm.slane %v623, %v628
    %v631 = vunpack.c.l.s4 1934713408
    %v632 = vunpack.c.0.s8 %v631
    %v633 = vperm.slane %v625, %v632
    %v634 = vrot.slane %v621, 4
    %v635 = vsel %vm182, %v634, %v615
    %v636 = vrot.slane %v615, 4
    %v637 = vsel %vm182, %v621, %v636
    %v639 = vunpack.c.l.s4 1934713408
    %v640 = vunpack.c.0.s8 %v639
    %v641 = vperm.slane %v635, %v640
    %v643 = vunpack.c.l.s4 1934713408
    %v644 = vunpack.c.0.s8 %v643
    %v645 = vperm.slane %v637, %v644
    %v646 = vrot.slane %v641, 4
    %v647 = vsel %vm182, %v646, %v629
    %v648 = vrot.slane %v629, 4
    %v649 = vsel %vm182, %v641, %v648
    %v650 = vrot.slane %v645, 4
    %v651 = vsel %vm182, %v650, %v633
    %v652 = vrot.slane %v633, 4
    %v653 = vsel %vm182, %v645, %v652
    %v654 = vpack.c.bf16 %v593, %v593
    %v655 = vpack.c.bf16 %v647, %v647
    %v656 = vpack.c.bf16 %v595, %v595
    %v657 = vpack.c.bf16 %v649, %v649
    %v658 = vpack.c.bf16 %v597, %v597
    %v659 = vpack.c.bf16 %v651, %v651
    %v660 = vpack.c.bf16 %v599, %v599
    %v661 = vpack.c.bf16 %v653, %v653
    %664 = vrot.lane.b32.xlu0 %v157, 64
    %v665 = vpop.permute.xlu0 %664
    %666 = vrot.lane.b32.xlu0 %v159, 64
    %v667 = vpop.permute.xlu0 %666
    %668 = vrot.lane.b32.xlu0 %v157, 32
    %v669 = vpop.permute.xlu0 %668
    %670 = vrot.lane.b32.xlu0 %v159, 32
    %v671 = vpop.permute.xlu0 %670
    %672 = vrot.lane.b32.xlu0 %v143, 64
    %v673 = vpop.permute.xlu0 %672
    %674 = vrot.lane.b32.xlu0 %v145, 64
    %v675 = vpop.permute.xlu0 %674
    %676 = vrot.lane.b32.xlu0 %v411, 64
    %v677 = vpop.permute.xlu0 %676
    %678 = vrot.lane.b32.xlu0 %v413, 64
    %v679 = vpop.permute.xlu0 %678
    %680 = vrot.lane.b32.xlu0 %v665, 64
    %v681 = vpop.permute.xlu0 %680
    %682 = vrot.lane.b32.xlu0 %v667, 64
    %v683 = vpop.permute.xlu0 %682
    %684 = vrot.lane.b32.xlu0 %v669, 64
    %v685 = vpop.permute.xlu0 %684
    %686 = vrot.lane.b32.xlu0 %v671, 64
    %v687 = vpop.permute.xlu0 %686
    %v696 = vrot.slane %v681, 4
    %v697 = vsel %vm182, %v696, %v673
    %v698 = vrot.slane %v673, 4
    %v699 = vsel %vm182, %v681, %v698
    %v701 = vunpack.c.l.s4 1983009808
    %v702 = vunpack.c.0.s8 %v701
    %v703 = vperm.slane %v697, %v702
    %v705 = vunpack.c.l.s4 1983009808
    %v706 = vunpack.c.0.s8 %v705
    %v707 = vperm.slane %v699, %v706
    %v708 = vrot.slane %v685, 4
    %v709 = vsel %vm182, %v708, %v677
    %v710 = vrot.slane %v677, 4
    %v711 = vsel %vm182, %v685, %v710
    %v713 = vunpack.c.l.s4 1983009808
    %v714 = vunpack.c.0.s8 %v713
    %v715 = vperm.slane %v709, %v714
    %v717 = vunpack.c.l.s4 1983009808
    %v718 = vunpack.c.0.s8 %v717
    %v719 = vperm.slane %v711, %v718
    %v720 = vrot.slane %v715, 4
    %v721 = vsel %vm182, %v720, %v703
    %v722 = vrot.slane %v703, 4
    %v723 = vsel %vm182, %v715, %v722
    %v725 = vunpack.c.l.s4 1934713408
    %v726 = vunpack.c.0.s8 %v725
    %v727 = vperm.slane %v721, %v726
    %v729 = vunpack.c.l.s4 1934713408
    %v730 = vunpack.c.0.s8 %v729
    %v731 = vperm.slane %v723, %v730
    %v732 = vrot.slane %v719, 4
    %v733 = vsel %vm182, %v732, %v707
    %v734 = vrot.slane %v707, 4
    %v735 = vsel %vm182, %v719, %v734
    %v737 = vunpack.c.l.s4 1934713408
    %v738 = vunpack.c.0.s8 %v737
    %v739 = vperm.slane %v733, %v738
    %v741 = vunpack.c.l.s4 1934713408
    %v742 = vunpack.c.0.s8 %v741
    %v743 = vperm.slane %v735, %v742
    %v744 = vrot.slane %v727, 4
    %v745 = vsel %vm182, 0.0, %v744
    %v746 = vrot.slane %v731, 4
    %v747 = vsel %vm182, 0.0, %v746
    %v748 = vrot.slane %v739, 4
    %v749 = vsel %vm182, 0.0, %v748
    %v750 = vrot.slane %v743, 4
    %v751 = vsel %vm182, 0.0, %v750
    %v752 = vrot.slane %v683, 4
    %v753 = vsel %vm182, %v752, %v675
    %v754 = vrot.slane %v675, 4
    %v755 = vsel %vm182, %v683, %v754
    %v757 = vunpack.c.l.s4 1983009808
    %v758 = vunpack.c.0.s8 %v757
    %v759 = vperm.slane %v753, %v758
    %v761 = vunpack.c.l.s4 1983009808
    %v762 = vunpack.c.0.s8 %v761
    %v763 = vperm.slane %v755, %v762
    %v764 = vrot.slane %v687, 4
    %v765 = vsel %vm182, %v764, %v679
    %v766 = vrot.slane %v679, 4
    %v767 = vsel %vm182, %v687, %v766
    %v769 = vunpack.c.l.s4 1983009808
    %v770 = vunpack.c.0.s8 %v769
    %v771 = vperm.slane %v765, %v770
    %v773 = vunpack.c.l.s4 1983009808
    %v774 = vunpack.c.0.s8 %v773
    %v775 = vperm.slane %v767, %v774
    %v776 = vrot.slane %v771, 4
    %v777 = vsel %vm182, %v776, %v759
    %v778 = vrot.slane %v759, 4
    %v779 = vsel %vm182, %v771, %v778
    %v781 = vunpack.c.l.s4 1934713408
    %v782 = vunpack.c.0.s8 %v781
    %v783 = vperm.slane %v777, %v782
    %v785 = vunpack.c.l.s4 1934713408
    %v786 = vunpack.c.0.s8 %v785
    %v787 = vperm.slane %v779, %v786
    %v788 = vrot.slane %v775, 4
    %v789 = vsel %vm182, %v788, %v763
    %v790 = vrot.slane %v763, 4
    %v791 = vsel %vm182, %v775, %v790
    %v793 = vunpack.c.l.s4 1934713408
    %v794 = vunpack.c.0.s8 %v793
    %v795 = vperm.slane %v789, %v794
    %v797 = vunpack.c.l.s4 1934713408
    %v798 = vunpack.c.0.s8 %v797
    %v799 = vperm.slane %v791, %v798
    %v800 = vrot.slane %v783, 4
    %v801 = vsel %vm182, 0.0, %v800
    %v802 = vrot.slane %v787, 4
    %v803 = vsel %vm182, 0.0, %v802
    %v804 = vrot.slane %v795, 4
    %v805 = vsel %vm182, 0.0, %v804
    %v806 = vrot.slane %v799, 4
    %v807 = vsel %vm182, 0.0, %v806
    %v808 = vsel %vm182, %v746, %v727
    %v810 = vunpack.c.l.s4 1983009808
    %v811 = vunpack.c.0.s8 %v810
    %v812 = vperm.slane %v808, %v811
    %v813 = vrot.slane %v747, 4
    %v814 = vsel %vm182, %v813, %v745
    %v816 = vunpack.c.l.s4 1983009808
    %v817 = vunpack.c.0.s8 %v816
    %v818 = vperm.slane %v814, %v817
    %v819 = vsel %vm182, %v750, %v739
    %v821 = vunpack.c.l.s4 1983009808
    %v822 = vunpack.c.0.s8 %v821
    %v823 = vperm.slane %v819, %v822
    %v824 = vrot.slane %v751, 4
    %v825 = vsel %vm182, %v824, %v749
    %v827 = vunpack.c.l.s4 1983009808
    %v828 = vunpack.c.0.s8 %v827
    %v829 = vperm.slane %v825, %v828
    %v830 = vrot.slane %v818, 4
    %v831 = vsel %vm182, %v830, %v812
    %v832 = vrot.slane %v812, 4
    %v833 = vsel %vm182, %v818, %v832
    %v835 = vunpack.c.l.s4 1934713408
    %v836 = vunpack.c.0.s8 %v835
    %v837 = vperm.slane %v831, %v836
    %v839 = vunpack.c.l.s4 1934713408
    %v840 = vunpack.c.0.s8 %v839
    %v841 = vperm.slane %v833, %v840
    %v842 = vrot.slane %v829, 4
    %v843 = vsel %vm182, %v842, %v823
    %v844 = vrot.slane %v823, 4
    %v845 = vsel %vm182, %v829, %v844
    %v847 = vunpack.c.l.s4 1934713408
    %v848 = vunpack.c.0.s8 %v847
    %v849 = vperm.slane %v843, %v848
    %v851 = vunpack.c.l.s4 1934713408
    %v852 = vunpack.c.0.s8 %v851
    %v853 = vperm.slane %v845, %v852
    %v854 = vrot.slane %v849, 4
    %v855 = vsel %vm182, %v854, %v837
    %v856 = vrot.slane %v837, 4
    %v857 = vsel %vm182, %v849, %v856
    %v858 = vrot.slane %v853, 4
    %v859 = vsel %vm182, %v858, %v841
    %v860 = vrot.slane %v841, 4
    %v861 = vsel %vm182, %v853, %v860
    %v862 = vsel %vm182, %v802, %v783
    %v864 = vunpack.c.l.s4 1983009808
    %v865 = vunpack.c.0.s8 %v864
    %v866 = vperm.slane %v862, %v865
    %v867 = vrot.slane %v803, 4
    %v868 = vsel %vm182, %v867, %v801
    %v870 = vunpack.c.l.s4 1983009808
    %v871 = vunpack.c.0.s8 %v870
    %v872 = vperm.slane %v868, %v871
    %v873 = vsel %vm182, %v806, %v795
    %v875 = vunpack.c.l.s4 1983009808
    %v876 = vunpack.c.0.s8 %v875
    %v877 = vperm.slane %v873, %v876
    %v878 = vrot.slane %v807, 4
    %v879 = vsel %vm182, %v878, %v805
    %v881 = vunpack.c.l.s4 1983009808
    %v882 = vunpack.c.0.s8 %v881
    %v883 = vperm.slane %v879, %v882
    %v884 = vrot.slane %v872, 4
    %v885 = vsel %vm182, %v884, %v866
    %v886 = vrot.slane %v866, 4
    %v887 = vsel %vm182, %v872, %v886
    %v889 = vunpack.c.l.s4 1934713408
    %v890 = vunpack.c.0.s8 %v889
    %v891 = vperm.slane %v885, %v890
    %v893 = vunpack.c.l.s4 1934713408
    %v894 = vunpack.c.0.s8 %v893
    %v895 = vperm.slane %v887, %v894
    %v896 = vrot.slane %v883, 4
    %v897 = vsel %vm182, %v896, %v877
    %v898 = vrot.slane %v877, 4
    %v899 = vsel %vm182, %v883, %v898
    %v901 = vunpack.c.l.s4 1934713408
    %v902 = vunpack.c.0.s8 %v901
    %v903 = vperm.slane %v897, %v902
    %v905 = vunpack.c.l.s4 1934713408
    %v906 = vunpack.c.0.s8 %v905
    %v907 = vperm.slane %v899, %v906
    %v908 = vrot.slane %v903, 4
    %v909 = vsel %vm182, %v908, %v891
    %v910 = vrot.slane %v891, 4
    %v911 = vsel %vm182, %v903, %v910
    %v912 = vrot.slane %v907, 4
    %v913 = vsel %vm182, %v912, %v895
    %v914 = vrot.slane %v895, 4
    %v915 = vsel %vm182, %v907, %v914
    %v916 = vpack.c.bf16 %v855, %v855
    %v917 = vpack.c.bf16 %v909, %v909
    %v918 = vpack.c.bf16 %v857, %v857
    %v919 = vpack.c.bf16 %v911, %v911
    %v920 = vpack.c.bf16 %v859, %v859
    %v921 = vpack.c.bf16 %v913, %v913
    %v922 = vpack.c.bf16 %v861, %v861
    %v923 = vpack.c.bf16 %v915, %v915
    %v926 = vunpack.c.l.b16 %v402
    %v927 = vunpack.c.l.b16 %v403
    %v928 = vpack.c.b16 %v927, %v926
    %v931 = vunpack.c.l.b16 %v654
    %v932 = vunpack.c.l.b16 %v655
    %v933 = vpack.c.b16 %v932, %v931
    %vm934 = vcmask 64512
    %v936 = vsel %vm934, %v928, 0
    %v939 = vsel %vm934, %v933, 0
    %941 = vmatpush.bf16.xpose.msra.mxu0 0
    %942 = vmatpush.bf16.xpose.msra.mxu0 0
    %943 = vmatpush.bf16.xpose.msra.mxu0 0
    %944 = vmatpush.bf16.xpose.msra.mxu0 0
    %945 = vmatpush.bf16.xpose.msra.mxu0 0
    %946 = vmatpush.bf16.xpose.msra.mxu0 0
    %947 = vmatpush.bf16.xpose.msra.mxu0 0
    %948 = vmatpush.bf16.xpose.msra.mxu0 %v939
    %949 = vmatmul.bf16.gmra.mxu0 %v936
    %v950 = vpop.f32.mrf.mxu0
    %v951 = vadd.f32 %v40, %v950
    %v952 = vpop.f32.mrf.mxu0
    %v953 = vadd.f32 %v41, %v952
    %954 = vdwg.mxu0
    %v957 = vunpack.c.l.b16 %v404
    %v958 = vunpack.c.l.b16 %v405
    %v959 = vpack.c.b16 %v958, %v957
    %v962 = vunpack.c.l.b16 %v656
    %v963 = vunpack.c.l.b16 %v657
    %v964 = vpack.c.b16 %v963, %v962
    %v966 = vsel %vm934, %v959, 0
    %v969 = vsel %vm934, %v964, 0
    %971 = vmatpush.bf16.xpose.msra.mxu0 0
    %972 = vmatpush.bf16.xpose.msra.mxu0 0
    %973 = vmatpush.bf16.xpose.msra.mxu0 0
    %974 = vmatpush.bf16.xpose.msra.mxu0 0
    %975 = vmatpush.bf16.xpose.msra.mxu0 0
    %976 = vmatpush.bf16.xpose.msra.mxu0 0
    %977 = vmatpush.bf16.xpose.msra.mxu0 0
    %978 = vmatpush.bf16.xpose.msra.mxu0 %v969
    %979 = vmatmul.bf16.gmra.mxu0 %v966
    %v980 = vpop.f32.mrf.mxu0
    %v981 = vadd.f32 %v40, %v980
    %v982 = vpop.f32.mrf.mxu0
    %v983 = vadd.f32 %v41, %v982
    %984 = vdwg.mxu0
    %v987 = vunpack.c.l.b16 %v406
    %v988 = vunpack.c.l.b16 %v407
    %v989 = vpack.c.b16 %v988, %v987
    %v992 = vunpack.c.l.b16 %v658
    %v993 = vunpack.c.l.b16 %v659
    %v994 = vpack.c.b16 %v993, %v992
    %v996 = vsel %vm934, %v989, 0
    %v999 = vsel %vm934, %v994, 0
    %1001 = vmatpush.bf16.xpose.msra.mxu0 0
    %1002 = vmatpush.bf16.xpose.msra.mxu0 0
    %1003 = vmatpush.bf16.xpose.msra.mxu0 0
    %1004 = vmatpush.bf16.xpose.msra.mxu0 0
    %1005 = vmatpush.bf16.xpose.msra.mxu0 0
    %1006 = vmatpush.bf16.xpose.msra.mxu0 0
    %1007 = vmatpush.bf16.xpose.msra.mxu0 0
    %1008 = vmatpush.bf16.xpose.msra.mxu0 %v999
    %1009 = vmatmul.bf16.gmra.mxu0 %v996
    %v1010 = vpop.f32.mrf.mxu0
    %v1011 = vadd.f32 %v40, %v1010
    %v1012 = vpop.f32.mrf.mxu0
    %v1013 = vadd.f32 %v41, %v1012
    %1014 = vdwg.mxu0
    %v1017 = vunpack.c.l.b16 %v408
    %v1018 = vunpack.c.l.b16 %v409
    %v1019 = vpack.c.b16 %v1018, %v1017
    %v1022 = vunpack.c.l.b16 %v660
    %v1023 = vunpack.c.l.b16 %v661
    %v1024 = vpack.c.b16 %v1023, %v1022
    %v1026 = vsel %vm934, %v1019, 0
    %v1029 = vsel %vm934, %v1024, 0
    %1031 = vmatpush.bf16.xpose.msra.mxu0 0
    %1032 = vmatpush.bf16.xpose.msra.mxu0 0
    %1033 = vmatpush.bf16.xpose.msra.mxu0 0
    %1034 = vmatpush.bf16.xpose.msra.mxu0 0
    %1035 = vmatpush.bf16.xpose.msra.mxu0 0
    %1036 = vmatpush.bf16.xpose.msra.mxu0 0
    %1037 = vmatpush.bf16.xpose.msra.mxu0 0
    %1038 = vmatpush.bf16.xpose.msra.mxu0 %v1029
    %1039 = vmatmul.bf16.gmra.mxu0 %v1026
    %v1040 = vpop.f32.mrf.mxu0
    %v1041 = vadd.f32 %v40, %v1040
    %v1042 = vpop.f32.mrf.mxu0
    %v1043 = vadd.f32 %v41, %v1042
    %1044 = vdwg.mxu0
    %v1045 = vmul.f32 %v951, 1.442695
    %v1046 = vpow.pop %v1045
    %v1047 = vmul.f32 %v953, 1.442695
    %v1048 = vpow.pop %v1047
    %v1049 = vmul.f32 %v981, 1.442695
    %v1050 = vpow.pop %v1049
    %v1051 = vmul.f32 %v983, 1.442695
    %v1052 = vpow.pop %v1051
    %v1053 = vmul.f32 %v1011, 1.442695
    %v1054 = vpow.pop %v1053
    %v1055 = vmul.f32 %v1013, 1.442695
    %v1056 = vpow.pop %v1055
    %v1057 = vmul.f32 %v1041, 1.442695
    %v1058 = vpow.pop %v1057
    %v1059 = vmul.f32 %v1043, 1.442695
    %v1060 = vpow.pop %v1059
    %vm1061 = vcmask 130048
    %v1062 = vsel %vm1061, %v1046, 0.0
    %1063 = vadd.xlane.f32.xlu0 %v1062
    %v1064 = vpop.xlane.xlu0 %1063
    %v1065 = vsel %vm1061, %v1048, 0.0
    %1066 = vadd.xlane.f32.xlu0 %v1065
    %v1067 = vpop.xlane.xlu0 %1066
    %v1068 = vsel %vm1061, %v1050, 0.0
    %1069 = vadd.xlane.f32.xlu0 %v1068
    %v1070 = vpop.xlane.xlu0 %1069
    %v1071 = vsel %vm1061, %v1052, 0.0
    %1072 = vadd.xlane.f32.xlu0 %v1071
    %v1073 = vpop.xlane.xlu0 %1072
    %v1074 = vsel %vm1061, %v1054, 0.0
    %1075 = vadd.xlane.f32.xlu0 %v1074
    %v1076 = vpop.xlane.xlu0 %1075
    %v1077 = vsel %vm1061, %v1056, 0.0
    %1078 = vadd.xlane.f32.xlu0 %v1077
    %v1079 = vpop.xlane.xlu0 %1078
    %v1080 = vsel %vm1061, %v1058, 0.0
    %1081 = vadd.xlane.f32.xlu0 %v1080
    %v1082 = vpop.xlane.xlu0 %1081
    %v1083 = vsel %vm1061, %v1060, 0.0
    %1084 = vadd.xlane.f32.xlu0 %v1083
    %v1085 = vpop.xlane.xlu0 %1084
    %v1086 = vrcp.pop %v1064
    %v1087 = vrcp.pop %v1067
    %v1088 = vrcp.pop %v1070
    %v1089 = vrcp.pop %v1073
    %v1090 = vrcp.pop %v1076
    %v1091 = vrcp.pop %v1079
    %v1092 = vrcp.pop %v1082
    %v1093 = vrcp.pop %v1085
    %v1094 = vmul.f32 %v1046, %v1086
    %v1095 = vmul.f32 %v1048, %v1087
    %v1096 = vmul.f32 %v1050, %v1088
    %v1097 = vmul.f32 %v1052, %v1089
    %v1098 = vmul.f32 %v1054, %v1090
    %v1099 = vmul.f32 %v1056, %v1091
    %v1100 = vmul.f32 %v1058, %v1092
    %v1101 = vmul.f32 %v1060, %v1093
    %v1102 = vpack.c.bf16 %v1094, %v1094
    %v1103 = vpack.c.bf16 %v1095, %v1095
    %v1104 = vpack.c.bf16 %v1096, %v1096
    %v1105 = vpack.c.bf16 %v1097, %v1097
    %v1106 = vpack.c.bf16 %v1098, %v1098
    %v1107 = vpack.c.bf16 %v1099, %v1099
    %v1108 = vpack.c.bf16 %v1100, %v1100
    %v1109 = vpack.c.bf16 %v1101, %v1101
    %v1112 = vunpack.c.l.b16 %v1102
    %v1113 = vunpack.c.l.b16 %v1103
    %v1114 = vpack.c.b16 %v1113, %v1112
    %v1117 = vunpack.c.l.b16 %v916
    %v1118 = vunpack.c.l.b16 %v917
    %v1119 = vpack.c.b16 %v1118, %v1117
    %v1122 = vsel %vm1061, %v1114, 0
    %1124 = vmatpush.bf16.msra.mxu0 0
    %1125 = vmatpush.bf16.msra.mxu0 0
    %1126 = vmatpush.bf16.msra.mxu0 0
    %1127 = vmatpush.bf16.msra.mxu0 0
    %1128 = vmatpush.bf16.msra.mxu0 0
    %1129 = vmatpush.bf16.msra.mxu0 0
    %1130 = vmatpush.bf16.msra.mxu0 0
    %1131 = vmatpush.bf16.msra.mxu0 %v1119
    %1132 = vmatmul.bf16.gmra.mxu0 %v1122
    %v1133 = vpop.f32.mrf.mxu0
    %v1134 = vadd.f32 0.0, %v1133
    %v1135 = vpop.f32.mrf.mxu0
    %v1136 = vadd.f32 0.0, %v1135
    %1137 = vdwg.mxu0
    %v1140 = vunpack.c.l.b16 %v1104
    %v1141 = vunpack.c.l.b16 %v1105
    %v1142 = vpack.c.b16 %v1141, %v1140
    %v1145 = vunpack.c.l.b16 %v918
    %v1146 = vunpack.c.l.b16 %v919
    %v1147 = vpack.c.b16 %v1146, %v1145
    %v1150 = vsel %vm1061, %v1142, 0
    %1152 = vmatpush.bf16.msra.mxu0 0
    %1153 = vmatpush.bf16.msra.mxu0 0
    %1154 = vmatpush.bf16.msra.mxu0 0
    %1155 = vmatpush.bf16.msra.mxu0 0
    %1156 = vmatpush.bf16.msra.mxu0 0
    %1157 = vmatpush.bf16.msra.mxu0 0
    %1158 = vmatpush.bf16.msra.mxu0 0
    %1159 = vmatpush.bf16.msra.mxu0 %v1147
    %1160 = vmatmul.bf16.gmra.mxu0 %v1150
    %v1161 = vpop.f32.mrf.mxu0
    %v1162 = vadd.f32 0.0, %v1161
    %v1163 = vpop.f32.mrf.mxu0
    %v1164 = vadd.f32 0.0, %v1163
    %1165 = vdwg.mxu0
    %v1168 = vunpack.c.l.b16 %v1106
    %v1169 = vunpack.c.l.b16 %v1107
    %v1170 = vpack.c.b16 %v1169, %v1168
    %v1173 = vunpack.c.l.b16 %v920
    %v1174 = vunpack.c.l.b16 %v921
    %v1175 = vpack.c.b16 %v1174, %v1173
    %v1178 = vsel %vm1061, %v1170, 0
    %1180 = vmatpush.bf16.msra.mxu0 0
    %1181 = vmatpush.bf16.msra.mxu0 0
    %1182 = vmatpush.bf16.msra.mxu0 0
    %1183 = vmatpush.bf16.msra.mxu0 0
    %1184 = vmatpush.bf16.msra.mxu0 0
    %1185 = vmatpush.bf16.msra.mxu0 0
    %1186 = vmatpush.bf16.msra.mxu0 0
    %1187 = vmatpush.bf16.msra.mxu0 %v1175
    %1188 = vmatmul.bf16.gmra.mxu0 %v1178
    %v1189 = vpop.f32.mrf.mxu0
    %v1190 = vadd.f32 0.0, %v1189
    %v1191 = vpop.f32.mrf.mxu0
    %v1192 = vadd.f32 0.0, %v1191
    %1193 = vdwg.mxu0
    %v1196 = vunpack.c.l.b16 %v1108
    %v1197 = vunpack.c.l.b16 %v1109
    %v1198 = vpack.c.b16 %v1197, %v1196
    %v1201 = vunpack.c.l.b16 %v922
    %v1202 = vunpack.c.l.b16 %v923
    %v1203 = vpack.c.b16 %v1202, %v1201
    %v1206 = vsel %vm1061, %v1198, 0
    %1208 = vmatpush.bf16.msra.mxu0 0
    %1209 = vmatpush.bf16.msra.mxu0 0
    %1210 = vmatpush.bf16.msra.mxu0 0
    %1211 = vmatpush.bf16.msra.mxu0 0
    %1212 = vmatpush.bf16.msra.mxu0 0
    %1213 = vmatpush.bf16.msra.mxu0 0
    %1214 = vmatpush.bf16.msra.mxu0 0
    %1215 = vmatpush.bf16.msra.mxu0 %v1203
    %1216 = vmatmul.bf16.gmra.mxu0 %v1206
    %v1217 = vpop.f32.mrf.mxu0
    %v1218 = vadd.f32 0.0, %v1217
    %v1219 = vpop.f32.mrf.mxu0
    %v1220 = vadd.f32 0.0, %v1219
    %1221 = vdwg.mxu0
    %v1222 = vsel %vm129, %v1134, 0.0
    %v1223 = vsel %vm129, %v1162, 0.0
    %v1224 = vadd.f32 %v1222, %v1223
    %v1225 = vsel %vm129, %v1190, 0.0
    %v1226 = vadd.f32 %v1224, %v1225
    %v1227 = vsel %vm129, %v1218, 0.0
    %v1228 = vadd.f32 %v1226, %v1227
    %v1229 = vsel %vm129, %v1136, 0.0
    %v1230 = vsel %vm129, %v1164, 0.0
    %v1231 = vadd.f32 %v1229, %v1230
    %v1232 = vsel %vm129, %v1192, 0.0
    %v1233 = vadd.f32 %v1231, %v1232
    %v1234 = vsel %vm129, %v1220, 0.0
    %v1235 = vadd.f32 %v1233, %v1234
    %v1236 = vperm.slane %v97, 0
    %v1237 = vadd.f32 %v1228, %v1236
    %v1238 = vadd.f32 %v1235, %v1236
    %v1239 = vadd.f32 %v93, %v1237
    %v1240 = vadd.f32 %v95, %v1238
    %v1241 = vsel %vm129, %v1239, 0.0
    %1242 = vadd.xlane.f32.xlu0 %v1241
    %v1243 = vpop.xlane.xlu0 %1242
    %v1244 = vsel %vm129, %v1240, 0.0
    %1245 = vadd.xlane.f32.xlu0 %v1244
    %v1246 = vpop.xlane.xlu0 %1245
    %v1247 = vrcp.pop 32.0
    %v1248 = vmul.f32 32.0, %v1247
    %v1249 = vsub.f32 1.0, %v1248
    %v1250 = vmul.f32 %v1247, %v1249
    %v1251 = vadd.f32 %v1247, %v1250
    %vm1252 = vweird.f32 %v1247
    %v1253 = vsel %vm1252, %v1247, %v1251
    %v1254 = vmul.f32 %v1243, %v1253
    %v1255 = vmul.f32 %v1246, %v1253
    %v1256 = vsub.f32 %v1239, %v1254
    %v1257 = vsub.f32 %v1240, %v1255
    %v1258 = vmul.f32 %v1256, %v1256
    %v1259 = vmul.f32 %v1257, %v1257
    %v1260 = vsel %vm129, %v1258, 0.0
    %1261 = vadd.xlane.f32.xlu0 %v1260
    %v1262 = vpop.xlane.xlu0 %1261
    %v1263 = vsel %vm129, %v1259, 0.0
    %1264 = vadd.xlane.f32.xlu0 %v1263
    %v1265 = vpop.xlane.xlu0 %1264
    %v1266 = vmul.f32 %v1262, %v1253
    %v1267 = vmul.f32 %v1265, %v1253
    %v1268 = vadd.f32 %v1266, 1e-05
    %v1269 = vadd.f32 %v1267, 1e-05
    %v1270 = vrsqrt.pop %v1268
    %v1271 = vmul.f32 %v1270, %v1268
    %v1272 = vmul.f32 %v1271, %v1270
    %v1273 = vmul.f32 0.5, %v1272
    %v1274 = vsub.f32 1.5, %v1273
    %v1275 = vmul.f32 %v1270, %v1274
    %vm1276 = vweird.f32 %v1268
    %vm1277 = vweird.f32 %v1270
    %vm1278 = vmor %vm1276, %vm1277
    %v1279 = vsel %vm1278, %v1270, %v1275
    %v1280 = vrsqrt.pop %v1269
    %v1281 = vmul.f32 %v1280, %v1269
    %v1282 = vmul.f32 %v1281, %v1280
    %v1283 = vmul.f32 0.5, %v1282
    %v1284 = vsub.f32 1.5, %v1283
    %v1285 = vmul.f32 %v1280, %v1284
    %vm1286 = vweird.f32 %v1269
    %vm1287 = vweird.f32 %v1280
    %vm1288 = vmor %vm1286, %vm1287
    %v1289 = vsel %vm1288, %v1280, %v1285
    %v1290 = vmul.f32 %v1256, %v1279
    %v1291 = vmul.f32 %v1257, %v1289
    %v1292 = vperm.slane %v97, 2
    %v1293 = vmul.f32 %v1290, %v1292
    %v1294 = vmul.f32 %v1291, %v1292
    %v1295 = vperm.slane %v97, 3
    %v1296 = vadd.f32 %v1293, %v1295
    %v1297 = vadd.f32 %v1294, %v1295
    %v1298 = vpack.c.bf16 %v1297, %v1296
    %v1299 = vld [vmem:[%s6] sm:$0xf]
    %v1300 = vld [vmem:[%s6 + $0x4] sm:$0xf]
    %v1301 = vld [vmem:[%s6 + $0x8] sm:$0xf]
    %v1302 = vld [vmem:[%s6 + $0xc] sm:$0xf]
    %v1303 = vld [vmem:[%s7] sm:$0x1]
    %v1304 = vperm.slane %v1303, 0
    %v1309 = vunpack.c.l.b16 %v1299
    %v1310 = vunpack.c.l.b16 %v1300
    %v1311 = vunpack.c.l.b16 %v1301
    %v1312 = vunpack.c.l.b16 %v1302
    %v1313 = vpack.c.b16 %v1310, %v1309
    %v1314 = vpack.c.b16 %v1312, %v1311
    %v1318 = vsel %vm129, %v1298, 0
    %1320 = vmatpush.bf16.msra.mxu0 0
    %1321 = vmatpush.bf16.msra.mxu0 0
    %1322 = vmatpush.bf16.msra.mxu0 0
    %1323 = vmatpush.bf16.msra.mxu0 0
    %1324 = vmatpush.bf16.msra.mxu0 0
    %1325 = vmatpush.bf16.msra.mxu0 0
    %1326 = vmatpush.bf16.msra.mxu0 %v1314
    %1327 = vmatpush.bf16.msra.mxu0 %v1313
    %1328 = vmatmul.bf16.gmra.mxu0 %v1318
    %v1329 = vpop.f32.mrf.mxu0
    %v1330 = vadd.f32 %v1304, %v1329
    %v1331 = vpop.f32.mrf.mxu0
    %v1332 = vadd.f32 %v1304, %v1331
    %1333 = vdwg.mxu0
    %v1334 = vmul.f32 %v1330, 0.5
    %v1335 = vmul.f32 %v1332, 0.5
    %v1336 = vmul.f32 %v1330, 0.044715
    %v1337 = vmul.f32 %v1332, 0.044715
    %v1338 = vmul.f32 %v1336, %v1330
    %v1339 = vmul.f32 %v1337, %v1332
    %v1340 = vmul.f32 %v1338, %v1330
    %v1341 = vmul.f32 %v1339, %v1332
    %v1342 = vadd.f32 %v1330, %v1340
    %v1343 = vadd.f32 %v1332, %v1341
    %v1344 = vmul.f32 %v1342, 0.7978846
    %v1345 = vmul.f32 %v1343, 0.7978846
    %v1346 = vtanh.pop %v1344
    %v1347 = vtanh.pop %v1345
    %v1348 = vadd.f32 %v1346, 1.0
    %v1349 = vadd.f32 %v1347, 1.0
    %v1350 = vmul.f32 %v1334, %v1348
    %v1351 = vmul.f32 %v1335, %v1349
    %v1352 = vpack.c.bf16 %v1351, %v1350
    %v1353 = vld [vmem:[%s8] sm:$0xf]
    %v1354 = vld [vmem:[%s8 + $0x4] sm:$0xf]
    %v1355 = vld [vmem:[%s8 + $0x8] sm:$0xf]
    %v1356 = vld [vmem:[%s8 + $0xc] sm:$0xf]
    %v1357 = vld [vmem:[%s8 + $0x10] sm:$0xf]
    %v1358 = vld [vmem:[%s8 + $0x14] sm:$0xf]
    %v1359 = vld [vmem:[%s8 + $0x18] sm:$0xf]
    %v1360 = vld [vmem:[%s8 + $0x1c] sm:$0xf]
    %v1361 = vld [vmem:[%s8 + $0x20] sm:$0xf]
    %v1362 = vld [vmem:[%s8 + $0x24] sm:$0xf]
    %v1363 = vld [vmem:[%s8 + $0x28] sm:$0xf]
    %v1364 = vld [vmem:[%s8 + $0x2c] sm:$0xf]
    %v1365 = vld [vmem:[%s8 + $0x30] sm:$0xf]
    %v1366 = vld [vmem:[%s8 + $0x34] sm:$0xf]
    %v1367 = vld [vmem:[%s8 + $0x38] sm:$0xf]
    %v1368 = vld [vmem:[%s8 + $0x3c] sm:$0xf]
    %v1369 = vperm.slane %v97, 1
    %v1386 = vunpack.c.l.b16 %v1353
    %v1387 = vunpack.c.l.b16 %v1354
    %v1388 = vunpack.c.l.b16 %v1355
    %v1389 = vunpack.c.l.b16 %v1356
    %v1390 = vunpack.c.l.b16 %v1357
    %v1391 = vunpack.c.l.b16 %v1358
    %v1392 = vunpack.c.l.b16 %v1359
    %v1393 = vunpack.c.l.b16 %v1360
    %v1394 = vunpack.c.l.b16 %v1361
    %v1395 = vunpack.c.l.b16 %v1362
    %v1396 = vunpack.c.l.b16 %v1363
    %v1397 = vunpack.c.l.b16 %v1364
    %v1398 = vunpack.c.l.b16 %v1365
    %v1399 = vunpack.c.l.b16 %v1366
    %v1400 = vunpack.c.l.b16 %v1367
    %v1401 = vunpack.c.l.b16 %v1368
    %v1402 = vpack.c.b16 %v1387, %v1386
    %v1403 = vpack.c.b16 %v1389, %v1388
    %v1404 = vpack.c.b16 %v1391, %v1390
    %v1405 = vpack.c.b16 %v1393, %v1392
    %v1406 = vpack.c.b16 %v1395, %v1394
    %v1407 = vpack.c.b16 %v1397, %v1396
    %v1408 = vpack.c.b16 %v1399, %v1398
    %v1409 = vpack.c.b16 %v1401, %v1400
    %1418 = vmatpush.bf16.msra.mxu0 %v1409
    %1419 = vmatpush.bf16.msra.mxu0 %v1408
    %1420 = vmatpush.bf16.msra.mxu0 %v1407
    %1421 = vmatpush.bf16.msra.mxu0 %v1406
    %1422 = vmatpush.bf16.msra.mxu0 %v1405
    %1423 = vmatpush.bf16.msra.mxu0 %v1404
    %1424 = vmatpush.bf16.msra.mxu0 %v1403
    %1425 = vmatpush.bf16.msra.mxu0 %v1402
    %1426 = vmatmul.bf16.gmra.mxu0 %v1352
    %v1427 = vpop.f32.mrf.mxu0
    %v1428 = vadd.f32 %v1369, %v1427
    %v1429 = vpop.f32.mrf.mxu0
    %v1430 = vadd.f32 %v1369, %v1429
    %1431 = vdwg.mxu0
    %v1432 = vadd.f32 %v1296, %v1428
    %v1433 = vadd.f32 %v1297, %v1430
    %v1434 = vsel %vm129, %v1432, 0.0
    %1435 = vadd.xlane.f32.xlu0 %v1434
    %v1436 = vpop.xlane.xlu0 %1435
    %v1437 = vsel %vm129, %v1433, 0.0
    %1438 = vadd.xlane.f32.xlu0 %v1437
    %v1439 = vpop.xlane.xlu0 %1438
    %v1440 = vmul.f32 %v1436, %v1253
    %v1441 = vmul.f32 %v1439, %v1253
    %v1442 = vsub.f32 %v1432, %v1440
    %v1443 = vsub.f32 %v1433, %v1441
    %v1444 = vmul.f32 %v1442, %v1442
    %v1445 = vmul.f32 %v1443, %v1443
    %v1446 = vsel %vm129, %v1444, 0.0
    %1447 = vadd.xlane.f32.xlu0 %v1446
    %v1448 = vpop.xlane.xlu0 %1447
    %v1449 = vsel %vm129, %v1445, 0.0
    %1450 = vadd.xlane.f32.xlu0 %v1449
    %v1451 = vpop.xlane.xlu0 %1450
    %v1452 = vmul.f32 %v1448, %v1253
    %v1453 = vmul.f32 %v1451, %v1253
    %v1454 = vadd.f32 %v1452, 1e-05
    %v1455 = vadd.f32 %v1453, 1e-05
    %v1456 = vrsqrt.pop %v1454
    %v1457 = vmul.f32 %v1456, %v1454
    %v1458 = vmul.f32 %v1457, %v1456
    %v1459 = vmul.f32 0.5, %v1458
    %v1460 = vsub.f32 1.5, %v1459
    %v1461 = vmul.f32 %v1456, %v1460
    %vm1462 = vweird.f32 %v1454
    %vm1463 = vweird.f32 %v1456
    %vm1464 = vmor %vm1462, %vm1463
    %v1465 = vsel %vm1464, %v1456, %v1461
    %v1466 = vrsqrt.pop %v1455
    %v1467 = vmul.f32 %v1466, %v1455
    %v1468 = vmul.f32 %v1467, %v1466
    %v1469 = vmul.f32 0.5, %v1468
    %v1470 = vsub.f32 1.5, %v1469
    %v1471 = vmul.f32 %v1466, %v1470
    %vm1472 = vweird.f32 %v1455
    %vm1473 = vweird.f32 %v1466
    %vm1474 = vmor %vm1472, %vm1473
    %v1475 = vsel %vm1474, %v1466, %v1471
    %v1476 = vmul.f32 %v1442, %v1465
    %v1477 = vmul.f32 %v1443, %v1475
    %v1478 = vperm.slane %v97, 4
    %v1479 = vmul.f32 %v1476, %v1478
    %v1480 = vmul.f32 %v1477, %v1478
    %v1481 = vperm.slane %v97, 5
    %v1482 = vadd.f32 %v1479, %v1481
    %v1483 = vadd.f32 %v1480, %v1481
    %s1484 = scalar_lea.vmem %s9, 8
    %v1485 = vld [vmem:[%s1484] sm:$0x3f]
    %v1486 = vpack.c.bf16 %v1483, %v1482
    %s1487 = scalar_lea.vmem %s4, 32
    %v1488 = vld [vmem:[%s1487] sm:$0xff]
    %v1489 = vld [vmem:[%s1487 + $0x8] sm:$0xff]
    %v1490 = vld [vmem:[%s1487 + $0x10] sm:$0xff]
    %v1491 = vld [vmem:[%s1487 + $0x18] sm:$0xff]
    %s1492 = scalar_lea.vmem %s5, 1
    %v1493 = vld [vmem:[%s1492] ss:$2 sm:$0x3]
    %v1495 = vperm.slane %v1493, 0
    %v1496 = vperm.slane %v1493, 1
    %v1503 = vunpack.c.l.b16 %v1488
    %v1504 = vunpack.c.h.b16 %v1488
    %v1505 = vunpack.c.l.b16 %v1489
    %v1506 = vunpack.c.h.b16 %v1489
    %v1507 = vunpack.c.l.b16 %v1490
    %v1508 = vunpack.c.h.b16 %v1490
    %v1509 = vunpack.c.l.b16 %v1491
    %v1510 = vunpack.c.h.b16 %v1491
    %v1511 = vpack.c.b16 %v1505, %v1503
    %v1512 = vpack.c.b16 %v1506, %v1504
    %v1513 = vpack.c.b16 %v1509, %v1507
    %v1514 = vpack.c.b16 %v1510, %v1508
    %v1520 = vsel %vm129, %v1486, 0
    %1522 = vmatpush.bf16.msra.mxu0 0
    %1523 = vmatpush.bf16.msra.mxu0 0
    %1524 = vmatpush.bf16.msra.mxu0 0
    %1525 = vmatpush.bf16.msra.mxu0 0
    %1526 = vmatpush.bf16.msra.mxu0 0
    %1527 = vmatpush.bf16.msra.mxu0 0
    %1528 = vmatpush.bf16.msra.mxu0 %v1513
    %1529 = vmatpush.bf16.msra.mxu0 %v1511
    %1530 = vmatmul.bf16.gmra.mxu0 %v1520
    %v1531 = vpop.f32.mrf.mxu0
    %v1532 = vadd.f32 %v1495, %v1531
    %v1533 = vpop.f32.mrf.mxu0
    %v1534 = vadd.f32 %v1495, %v1533
    %1535 = vdwg.mxu0
    %1536 = vmatpush.bf16.msra.mxu0 0
    %1537 = vmatpush.bf16.msra.mxu0 0
    %1538 = vmatpush.bf16.msra.mxu0 0
    %1539 = vmatpush.bf16.msra.mxu0 0
    %1540 = vmatpush.bf16.msra.mxu0 0
    %1541 = vmatpush.bf16.msra.mxu0 0
    %1542 = vmatpush.bf16.msra.mxu0 %v1514
    %1543 = vmatpush.bf16.msra.mxu0 %v1512
    %1544 = vmatmul.bf16.gmra.mxu0 %v1520
    %v1545 = vpop.f32.mrf.mxu0
    %v1546 = vadd.f32 %v1496, %v1545
    %v1547 = vpop.f32.mrf.mxu0
    %v1548 = vadd.f32 %v1496, %v1547
    %1549 = vdwg.mxu0
    %1552 = vrot.lane.b32.xlu0 %v1532, 120
    %v1553 = vpop.permute.xlu0 %1552
    %1554 = vrot.lane.b32.xlu0 %v1534, 120
    %v1555 = vpop.permute.xlu0 %1554
    %1558 = vrot.lane.b32.xlu0 %v1532, 112
    %v1559 = vpop.permute.xlu0 %1558
    %1560 = vrot.lane.b32.xlu0 %v1534, 112
    %v1561 = vpop.permute.xlu0 %1560
    %1564 = vrot.lane.b32.xlu0 %v1532, 104
    %v1565 = vpop.permute.xlu0 %1564
    %1566 = vrot.lane.b32.xlu0 %v1534, 104
    %v1567 = vpop.permute.xlu0 %1566
    %v1570 = vrot.slane %v1559, 4
    %v1571 = vsel %vm182, %v1570, %v1532
    %v1572 = vrot.slane %v1532, 4
    %v1573 = vsel %vm182, %v1559, %v1572
    %v1575 = vunpack.c.l.s4 1983009808
    %v1576 = vunpack.c.0.s8 %v1575
    %v1577 = vperm.slane %v1571, %v1576
    %v1579 = vunpack.c.l.s4 1983009808
    %v1580 = vunpack.c.0.s8 %v1579
    %v1581 = vperm.slane %v1573, %v1580
    %v1582 = vrot.slane %v1565, 4
    %v1583 = vsel %vm182, %v1582, %v1553
    %v1584 = vrot.slane %v1553, 4
    %v1585 = vsel %vm182, %v1565, %v1584
    %v1587 = vunpack.c.l.s4 1983009808
    %v1588 = vunpack.c.0.s8 %v1587
    %v1589 = vperm.slane %v1583, %v1588
    %v1591 = vunpack.c.l.s4 1983009808
    %v1592 = vunpack.c.0.s8 %v1591
    %v1593 = vperm.slane %v1585, %v1592
    %v1594 = vrot.slane %v1589, 4
    %v1595 = vsel %vm182, %v1594, %v1577
    %v1596 = vrot.slane %v1577, 4
    %v1597 = vsel %vm182, %v1589, %v1596
    %v1599 = vunpack.c.l.s4 1934713408
    %v1600 = vunpack.c.0.s8 %v1599
    %v1601 = vperm.slane %v1595, %v1600
    %v1603 = vunpack.c.l.s4 1934713408
    %v1604 = vunpack.c.0.s8 %v1603
    %v1605 = vperm.slane %v1597, %v1604
    %v1606 = vrot.slane %v1593, 4
    %v1607 = vsel %vm182, %v1606, %v1581
    %v1608 = vrot.slane %v1581, 4
    %v1609 = vsel %vm182, %v1593, %v1608
    %v1611 = vunpack.c.l.s4 1934713408
    %v1612 = vunpack.c.0.s8 %v1611
    %v1613 = vperm.slane %v1607, %v1612
    %v1615 = vunpack.c.l.s4 1934713408
    %v1616 = vunpack.c.0.s8 %v1615
    %v1617 = vperm.slane %v1609, %v1616
    %v1618 = vrot.slane %v1601, 4
    %v1619 = vsel %vm182, 0.0, %v1618
    %v1620 = vrot.slane %v1605, 4
    %v1621 = vsel %vm182, 0.0, %v1620
    %v1622 = vrot.slane %v1613, 4
    %v1623 = vsel %vm182, 0.0, %v1622
    %v1624 = vrot.slane %v1617, 4
    %v1625 = vsel %vm182, 0.0, %v1624
    %v1626 = vrot.slane %v1561, 4
    %v1627 = vsel %vm182, %v1626, %v1534
    %v1628 = vrot.slane %v1534, 4
    %v1629 = vsel %vm182, %v1561, %v1628
    %v1631 = vunpack.c.l.s4 1983009808
    %v1632 = vunpack.c.0.s8 %v1631
    %v1633 = vperm.slane %v1627, %v1632
    %v1635 = vunpack.c.l.s4 1983009808
    %v1636 = vunpack.c.0.s8 %v1635
    %v1637 = vperm.slane %v1629, %v1636
    %v1638 = vrot.slane %v1567, 4
    %v1639 = vsel %vm182, %v1638, %v1555
    %v1640 = vrot.slane %v1555, 4
    %v1641 = vsel %vm182, %v1567, %v1640
    %v1643 = vunpack.c.l.s4 1983009808
    %v1644 = vunpack.c.0.s8 %v1643
    %v1645 = vperm.slane %v1639, %v1644
    %v1647 = vunpack.c.l.s4 1983009808
    %v1648 = vunpack.c.0.s8 %v1647
    %v1649 = vperm.slane %v1641, %v1648
    %v1650 = vrot.slane %v1645, 4
    %v1651 = vsel %vm182, %v1650, %v1633
    %v1652 = vrot.slane %v1633, 4
    %v1653 = vsel %vm182, %v1645, %v1652
    %v1655 = vunpack.c.l.s4 1934713408
    %v1656 = vunpack.c.0.s8 %v1655
    %v1657 = vperm.slane %v1651, %v1656
    %v1659 = vunpack.c.l.s4 1934713408
    %v1660 = vunpack.c.0.s8 %v1659
    %v1661 = vperm.slane %v1653, %v1660
    %v1662 = vrot.slane %v1649, 4
    %v1663 = vsel %vm182, %v1662, %v1637
    %v1664 = vrot.slane %v1637, 4
    %v1665 = vsel %vm182, %v1649, %v1664
    %v1667 = vunpack.c.l.s4 1934713408
    %v1668 = vunpack.c.0.s8 %v1667
    %v1669 = vperm.slane %v1663, %v1668
    %v1671 = vunpack.c.l.s4 1934713408
    %v1672 = vunpack.c.0.s8 %v1671
    %v1673 = vperm.slane %v1665, %v1672
    %v1674 = vrot.slane %v1657, 4
    %v1675 = vsel %vm182, 0.0, %v1674
    %v1676 = vrot.slane %v1661, 4
    %v1677 = vsel %vm182, 0.0, %v1676
    %v1678 = vrot.slane %v1669, 4
    %v1679 = vsel %vm182, 0.0, %v1678
    %v1680 = vrot.slane %v1673, 4
    %v1681 = vsel %vm182, 0.0, %v1680
    %v1682 = vsel %vm182, %v1620, %v1601
    %v1684 = vunpack.c.l.s4 1983009808
    %v1685 = vunpack.c.0.s8 %v1684
    %v1686 = vperm.slane %v1682, %v1685
    %v1687 = vrot.slane %v1621, 4
    %v1688 = vsel %vm182, %v1687, %v1619
    %v1690 = vunpack.c.l.s4 1983009808
    %v1691 = vunpack.c.0.s8 %v1690
    %v1692 = vperm.slane %v1688, %v1691
    %v1693 = vsel %vm182, %v1624, %v1613
    %v1695 = vunpack.c.l.s4 1983009808
    %v1696 = vunpack.c.0.s8 %v1695
    %v1697 = vperm.slane %v1693, %v1696
    %v1698 = vrot.slane %v1625, 4
    %v1699 = vsel %vm182, %v1698, %v1623
    %v1701 = vunpack.c.l.s4 1983009808
    %v1702 = vunpack.c.0.s8 %v1701
    %v1703 = vperm.slane %v1699, %v1702
    %v1704 = vrot.slane %v1692, 4
    %v1705 = vsel %vm182, %v1704, %v1686
    %v1706 = vrot.slane %v1686, 4
    %v1707 = vsel %vm182, %v1692, %v1706
    %v1709 = vunpack.c.l.s4 1934713408
    %v1710 = vunpack.c.0.s8 %v1709
    %v1711 = vperm.slane %v1705, %v1710
    %v1713 = vunpack.c.l.s4 1934713408
    %v1714 = vunpack.c.0.s8 %v1713
    %v1715 = vperm.slane %v1707, %v1714
    %v1716 = vrot.slane %v1703, 4
    %v1717 = vsel %vm182, %v1716, %v1697
    %v1718 = vrot.slane %v1697, 4
    %v1719 = vsel %vm182, %v1703, %v1718
    %v1721 = vunpack.c.l.s4 1934713408
    %v1722 = vunpack.c.0.s8 %v1721
    %v1723 = vperm.slane %v1717, %v1722
    %v1725 = vunpack.c.l.s4 1934713408
    %v1726 = vunpack.c.0.s8 %v1725
    %v1727 = vperm.slane %v1719, %v1726
    %v1728 = vrot.slane %v1723, 4
    %v1729 = vsel %vm182, %v1728, %v1711
    %v1730 = vrot.slane %v1711, 4
    %v1731 = vsel %vm182, %v1723, %v1730
    %v1732 = vrot.slane %v1727, 4
    %v1733 = vsel %vm182, %v1732, %v1715
    %v1734 = vrot.slane %v1715, 4
    %v1735 = vsel %vm182, %v1727, %v1734
    %v1736 = vsel %vm182, %v1676, %v1657
    %v1738 = vunpack.c.l.s4 1983009808
    %v1739 = vunpack.c.0.s8 %v1738
    %v1740 = vperm.slane %v1736, %v1739
    %v1741 = vrot.slane %v1677, 4
    %v1742 = vsel %vm182, %v1741, %v1675
    %v1744 = vunpack.c.l.s4 1983009808
    %v1745 = vunpack.c.0.s8 %v1744
    %v1746 = vperm.slane %v1742, %v1745
    %v1747 = vsel %vm182, %v1680, %v1669
    %v1749 = vunpack.c.l.s4 1983009808
    %v1750 = vunpack.c.0.s8 %v1749
    %v1751 = vperm.slane %v1747, %v1750
    %v1752 = vrot.slane %v1681, 4
    %v1753 = vsel %vm182, %v1752, %v1679
    %v1755 = vunpack.c.l.s4 1983009808
    %v1756 = vunpack.c.0.s8 %v1755
    %v1757 = vperm.slane %v1753, %v1756
    %v1758 = vrot.slane %v1746, 4
    %v1759 = vsel %vm182, %v1758, %v1740
    %v1760 = vrot.slane %v1740, 4
    %v1761 = vsel %vm182, %v1746, %v1760
    %v1763 = vunpack.c.l.s4 1934713408
    %v1764 = vunpack.c.0.s8 %v1763
    %v1765 = vperm.slane %v1759, %v1764
    %v1767 = vunpack.c.l.s4 1934713408
    %v1768 = vunpack.c.0.s8 %v1767
    %v1769 = vperm.slane %v1761, %v1768
    %v1770 = vrot.slane %v1757, 4
    %v1771 = vsel %vm182, %v1770, %v1751
    %v1772 = vrot.slane %v1751, 4
    %v1773 = vsel %vm182, %v1757, %v1772
    %v1775 = vunpack.c.l.s4 1934713408
    %v1776 = vunpack.c.0.s8 %v1775
    %v1777 = vperm.slane %v1771, %v1776
    %v1779 = vunpack.c.l.s4 1934713408
    %v1780 = vunpack.c.0.s8 %v1779
    %v1781 = vperm.slane %v1773, %v1780
    %v1782 = vrot.slane %v1777, 4
    %v1783 = vsel %vm182, %v1782, %v1765
    %v1784 = vrot.slane %v1765, 4
    %v1785 = vsel %vm182, %v1777, %v1784
    %v1786 = vrot.slane %v1781, 4
    %v1787 = vsel %vm182, %v1786, %v1769
    %v1788 = vrot.slane %v1769, 4
    %v1789 = vsel %vm182, %v1781, %v1788
    %v1790 = vpack.c.bf16 %v1729, %v1729
    %v1791 = vpack.c.bf16 %v1783, %v1783
    %v1792 = vpack.c.bf16 %v1731, %v1731
    %v1793 = vpack.c.bf16 %v1785, %v1785
    %v1794 = vpack.c.bf16 %v1733, %v1733
    %v1795 = vpack.c.bf16 %v1787, %v1787
    %v1796 = vpack.c.bf16 %v1735, %v1735
    %v1797 = vpack.c.bf16 %v1789, %v1789
    %1798 = vrot.lane.b32.xlu0 %v1532, 96
    %v1799 = vpop.permute.xlu0 %1798
    %1800 = vrot.lane.b32.xlu0 %v1534, 96
    %v1801 = vpop.permute.xlu0 %1800
    %1802 = vrot.lane.b32.xlu0 %v1553, 96
    %v1803 = vpop.permute.xlu0 %1802
    %1804 = vrot.lane.b32.xlu0 %v1555, 96
    %v1805 = vpop.permute.xlu0 %1804
    %1806 = vrot.lane.b32.xlu0 %v1559, 96
    %v1807 = vpop.permute.xlu0 %1806
    %1808 = vrot.lane.b32.xlu0 %v1561, 96
    %v1809 = vpop.permute.xlu0 %1808
    %1810 = vrot.lane.b32.xlu0 %v1565, 96
    %v1811 = vpop.permute.xlu0 %1810
    %1812 = vrot.lane.b32.xlu0 %v1567, 96
    %v1813 = vpop.permute.xlu0 %1812
    %v1822 = vrot.slane %v1807, 4
    %v1823 = vsel %vm182, %v1822, %v1799
    %v1824 = vrot.slane %v1799, 4
    %v1825 = vsel %vm182, %v1807, %v1824
    %v1827 = vunpack.c.l.s4 1983009808
    %v1828 = vunpack.c.0.s8 %v1827
    %v1829 = vperm.slane %v1823, %v1828
    %v1831 = vunpack.c.l.s4 1983009808
    %v1832 = vunpack.c.0.s8 %v1831
    %v1833 = vperm.slane %v1825, %v1832
    %v1834 = vrot.slane %v1811, 4
    %v1835 = vsel %vm182, %v1834, %v1803
    %v1836 = vrot.slane %v1803, 4
    %v1837 = vsel %vm182, %v1811, %v1836
    %v1839 = vunpack.c.l.s4 1983009808
    %v1840 = vunpack.c.0.s8 %v1839
    %v1841 = vperm.slane %v1835, %v1840
    %v1843 = vunpack.c.l.s4 1983009808
    %v1844 = vunpack.c.0.s8 %v1843
    %v1845 = vperm.slane %v1837, %v1844
    %v1846 = vrot.slane %v1841, 4
    %v1847 = vsel %vm182, %v1846, %v1829
    %v1848 = vrot.slane %v1829, 4
    %v1849 = vsel %vm182, %v1841, %v1848
    %v1851 = vunpack.c.l.s4 1934713408
    %v1852 = vunpack.c.0.s8 %v1851
    %v1853 = vperm.slane %v1847, %v1852
    %v1855 = vunpack.c.l.s4 1934713408
    %v1856 = vunpack.c.0.s8 %v1855
    %v1857 = vperm.slane %v1849, %v1856
    %v1858 = vrot.slane %v1845, 4
    %v1859 = vsel %vm182, %v1858, %v1833
    %v1860 = vrot.slane %v1833, 4
    %v1861 = vsel %vm182, %v1845, %v1860
    %v1863 = vunpack.c.l.s4 1934713408
    %v1864 = vunpack.c.0.s8 %v1863
    %v1865 = vperm.slane %v1859, %v1864
    %v1867 = vunpack.c.l.s4 1934713408
    %v1868 = vunpack.c.0.s8 %v1867
    %v1869 = vperm.slane %v1861, %v1868
    %v1870 = vrot.slane %v1853, 4
    %v1871 = vsel %vm182, 0.0, %v1870
    %v1872 = vrot.slane %v1857, 4
    %v1873 = vsel %vm182, 0.0, %v1872
    %v1874 = vrot.slane %v1865, 4
    %v1875 = vsel %vm182, 0.0, %v1874
    %v1876 = vrot.slane %v1869, 4
    %v1877 = vsel %vm182, 0.0, %v1876
    %v1878 = vrot.slane %v1809, 4
    %v1879 = vsel %vm182, %v1878, %v1801
    %v1880 = vrot.slane %v1801, 4
    %v1881 = vsel %vm182, %v1809, %v1880
    %v1883 = vunpack.c.l.s4 1983009808
    %v1884 = vunpack.c.0.s8 %v1883
    %v1885 = vperm.slane %v1879, %v1884
    %v1887 = vunpack.c.l.s4 1983009808
    %v1888 = vunpack.c.0.s8 %v1887
    %v1889 = vperm.slane %v1881, %v1888
    %v1890 = vrot.slane %v1813, 4
    %v1891 = vsel %vm182, %v1890, %v1805
    %v1892 = vrot.slane %v1805, 4
    %v1893 = vsel %vm182, %v1813, %v1892
    %v1895 = vunpack.c.l.s4 1983009808
    %v1896 = vunpack.c.0.s8 %v1895
    %v1897 = vperm.slane %v1891, %v1896
    %v1899 = vunpack.c.l.s4 1983009808
    %v1900 = vunpack.c.0.s8 %v1899
    %v1901 = vperm.slane %v1893, %v1900
    %v1902 = vrot.slane %v1897, 4
    %v1903 = vsel %vm182, %v1902, %v1885
    %v1904 = vrot.slane %v1885, 4
    %v1905 = vsel %vm182, %v1897, %v1904
    %v1907 = vunpack.c.l.s4 1934713408
    %v1908 = vunpack.c.0.s8 %v1907
    %v1909 = vperm.slane %v1903, %v1908
    %v1911 = vunpack.c.l.s4 1934713408
    %v1912 = vunpack.c.0.s8 %v1911
    %v1913 = vperm.slane %v1905, %v1912
    %v1914 = vrot.slane %v1901, 4
    %v1915 = vsel %vm182, %v1914, %v1889
    %v1916 = vrot.slane %v1889, 4
    %v1917 = vsel %vm182, %v1901, %v1916
    %v1919 = vunpack.c.l.s4 1934713408
    %v1920 = vunpack.c.0.s8 %v1919
    %v1921 = vperm.slane %v1915, %v1920
    %v1923 = vunpack.c.l.s4 1934713408
    %v1924 = vunpack.c.0.s8 %v1923
    %v1925 = vperm.slane %v1917, %v1924
    %v1926 = vrot.slane %v1909, 4
    %v1927 = vsel %vm182, 0.0, %v1926
    %v1928 = vrot.slane %v1913, 4
    %v1929 = vsel %vm182, 0.0, %v1928
    %v1930 = vrot.slane %v1921, 4
    %v1931 = vsel %vm182, 0.0, %v1930
    %v1932 = vrot.slane %v1925, 4
    %v1933 = vsel %vm182, 0.0, %v1932
    %v1934 = vsel %vm182, %v1872, %v1853
    %v1936 = vunpack.c.l.s4 1983009808
    %v1937 = vunpack.c.0.s8 %v1936
    %v1938 = vperm.slane %v1934, %v1937
    %v1939 = vrot.slane %v1873, 4
    %v1940 = vsel %vm182, %v1939, %v1871
    %v1942 = vunpack.c.l.s4 1983009808
    %v1943 = vunpack.c.0.s8 %v1942
    %v1944 = vperm.slane %v1940, %v1943
    %v1945 = vsel %vm182, %v1876, %v1865
    %v1947 = vunpack.c.l.s4 1983009808
    %v1948 = vunpack.c.0.s8 %v1947
    %v1949 = vperm.slane %v1945, %v1948
    %v1950 = vrot.slane %v1877, 4
    %v1951 = vsel %vm182, %v1950, %v1875
    %v1953 = vunpack.c.l.s4 1983009808
    %v1954 = vunpack.c.0.s8 %v1953
    %v1955 = vperm.slane %v1951, %v1954
    %v1956 = vrot.slane %v1944, 4
    %v1957 = vsel %vm182, %v1956, %v1938
    %v1958 = vrot.slane %v1938, 4
    %v1959 = vsel %vm182, %v1944, %v1958
    %v1961 = vunpack.c.l.s4 1934713408
    %v1962 = vunpack.c.0.s8 %v1961
    %v1963 = vperm.slane %v1957, %v1962
    %v1965 = vunpack.c.l.s4 1934713408
    %v1966 = vunpack.c.0.s8 %v1965
    %v1967 = vperm.slane %v1959, %v1966
    %v1968 = vrot.slane %v1955, 4
    %v1969 = vsel %vm182, %v1968, %v1949
    %v1970 = vrot.slane %v1949, 4
    %v1971 = vsel %vm182, %v1955, %v1970
    %v1973 = vunpack.c.l.s4 1934713408
    %v1974 = vunpack.c.0.s8 %v1973
    %v1975 = vperm.slane %v1969, %v1974
    %v1977 = vunpack.c.l.s4 1934713408
    %v1978 = vunpack.c.0.s8 %v1977
    %v1979 = vperm.slane %v1971, %v1978
    %v1980 = vrot.slane %v1975, 4
    %v1981 = vsel %vm182, %v1980, %v1963
    %v1982 = vrot.slane %v1963, 4
    %v1983 = vsel %vm182, %v1975, %v1982
    %v1984 = vrot.slane %v1979, 4
    %v1985 = vsel %vm182, %v1984, %v1967
    %v1986 = vrot.slane %v1967, 4
    %v1987 = vsel %vm182, %v1979, %v1986
    %v1988 = vsel %vm182, %v1928, %v1909
    %v1990 = vunpack.c.l.s4 1983009808
    %v1991 = vunpack.c.0.s8 %v1990
    %v1992 = vperm.slane %v1988, %v1991
    %v1993 = vrot.slane %v1929, 4
    %v1994 = vsel %vm182, %v1993, %v1927
    %v1996 = vunpack.c.l.s4 1983009808
    %v1997 = vunpack.c.0.s8 %v1996
    %v1998 = vperm.slane %v1994, %v1997
    %v1999 = vsel %vm182, %v1932, %v1921
    %v2001 = vunpack.c.l.s4 1983009808
    %v2002 = vunpack.c.0.s8 %v2001
    %v2003 = vperm.slane %v1999, %v2002
    %v2004 = vrot.slane %v1933, 4
    %v2005 = vsel %vm182, %v2004, %v1931
    %v2007 = vunpack.c.l.s4 1983009808
    %v2008 = vunpack.c.0.s8 %v2007
    %v2009 = vperm.slane %v2005, %v2008
    %v2010 = vrot.slane %v1998, 4
    %v2011 = vsel %vm182, %v2010, %v1992
    %v2012 = vrot.slane %v1992, 4
    %v2013 = vsel %vm182, %v1998, %v2012
    %v2015 = vunpack.c.l.s4 1934713408
    %v2016 = vunpack.c.0.s8 %v2015
    %v2017 = vperm.slane %v2011, %v2016
    %v2019 = vunpack.c.l.s4 1934713408
    %v2020 = vunpack.c.0.s8 %v2019
    %v2021 = vperm.slane %v2013, %v2020
    %v2022 = vrot.slane %v2009, 4
    %v2023 = vsel %vm182, %v2022, %v2003
    %v2024 = vrot.slane %v2003, 4
    %v2025 = vsel %vm182, %v2009, %v2024
    %v2027 = vunpack.c.l.s4 1934713408
    %v2028 = vunpack.c.0.s8 %v2027
    %v2029 = vperm.slane %v2023, %v2028
    %v2031 = vunpack.c.l.s4 1934713408
    %v2032 = vunpack.c.0.s8 %v2031
    %v2033 = vperm.slane %v2025, %v2032
    %v2034 = vrot.slane %v2029, 4
    %v2035 = vsel %vm182, %v2034, %v2017
    %v2036 = vrot.slane %v2017, 4
    %v2037 = vsel %vm182, %v2029, %v2036
    %v2038 = vrot.slane %v2033, 4
    %v2039 = vsel %vm182, %v2038, %v2021
    %v2040 = vrot.slane %v2021, 4
    %v2041 = vsel %vm182, %v2033, %v2040
    %v2042 = vpack.c.bf16 %v1981, %v1981
    %v2043 = vpack.c.bf16 %v2035, %v2035
    %v2044 = vpack.c.bf16 %v1983, %v1983
    %v2045 = vpack.c.bf16 %v2037, %v2037
    %v2046 = vpack.c.bf16 %v1985, %v1985
    %v2047 = vpack.c.bf16 %v2039, %v2039
    %v2048 = vpack.c.bf16 %v1987, %v1987
    %v2049 = vpack.c.bf16 %v2041, %v2041
    %2052 = vrot.lane.b32.xlu0 %v1546, 64
    %v2053 = vpop.permute.xlu0 %2052
    %2054 = vrot.lane.b32.xlu0 %v1548, 64
    %v2055 = vpop.permute.xlu0 %2054
    %2056 = vrot.lane.b32.xlu0 %v1546, 32
    %v2057 = vpop.permute.xlu0 %2056
    %2058 = vrot.lane.b32.xlu0 %v1548, 32
    %v2059 = vpop.permute.xlu0 %2058
    %2060 = vrot.lane.b32.xlu0 %v1532, 64
    %v2061 = vpop.permute.xlu0 %2060
    %2062 = vrot.lane.b32.xlu0 %v1534, 64
    %v2063 = vpop.permute.xlu0 %2062
    %2064 = vrot.lane.b32.xlu0 %v1799, 64
    %v2065 = vpop.permute.xlu0 %2064
    %2066 = vrot.lane.b32.xlu0 %v1801, 64
    %v2067 = vpop.permute.xlu0 %2066
    %2068 = vrot.lane.b32.xlu0 %v2053, 64
    %v2069 = vpop.permute.xlu0 %2068
    %2070 = vrot.lane.b32.xlu0 %v2055, 64
    %v2071 = vpop.permute.xlu0 %2070
    %2072 = vrot.lane.b32.xlu0 %v2057, 64
    %v2073 = vpop.permute.xlu0 %2072
    %2074 = vrot.lane.b32.xlu0 %v2059, 64
    %v2075 = vpop.permute.xlu0 %2074
    %v2084 = vrot.slane %v2069, 4
    %v2085 = vsel %vm182, %v2084, %v2061
    %v2086 = vrot.slane %v2061, 4
    %v2087 = vsel %vm182, %v2069, %v2086
    %v2089 = vunpack.c.l.s4 1983009808
    %v2090 = vunpack.c.0.s8 %v2089
    %v2091 = vperm.slane %v2085, %v2090
    %v2093 = vunpack.c.l.s4 1983009808
    %v2094 = vunpack.c.0.s8 %v2093
    %v2095 = vperm.slane %v2087, %v2094
    %v2096 = vrot.slane %v2073, 4
    %v2097 = vsel %vm182, %v2096, %v2065
    %v2098 = vrot.slane %v2065, 4
    %v2099 = vsel %vm182, %v2073, %v2098
    %v2101 = vunpack.c.l.s4 1983009808
    %v2102 = vunpack.c.0.s8 %v2101
    %v2103 = vperm.slane %v2097, %v2102
    %v2105 = vunpack.c.l.s4 1983009808
    %v2106 = vunpack.c.0.s8 %v2105
    %v2107 = vperm.slane %v2099, %v2106
    %v2108 = vrot.slane %v2103, 4
    %v2109 = vsel %vm182, %v2108, %v2091
    %v2110 = vrot.slane %v2091, 4
    %v2111 = vsel %vm182, %v2103, %v2110
    %v2113 = vunpack.c.l.s4 1934713408
    %v2114 = vunpack.c.0.s8 %v2113
    %v2115 = vperm.slane %v2109, %v2114
    %v2117 = vunpack.c.l.s4 1934713408
    %v2118 = vunpack.c.0.s8 %v2117
    %v2119 = vperm.slane %v2111, %v2118
    %v2120 = vrot.slane %v2107, 4
    %v2121 = vsel %vm182, %v2120, %v2095
    %v2122 = vrot.slane %v2095, 4
    %v2123 = vsel %vm182, %v2107, %v2122
    %v2125 = vunpack.c.l.s4 1934713408
    %v2126 = vunpack.c.0.s8 %v2125
    %v2127 = vperm.slane %v2121, %v2126
    %v2129 = vunpack.c.l.s4 1934713408
    %v2130 = vunpack.c.0.s8 %v2129
    %v2131 = vperm.slane %v2123, %v2130
    %v2132 = vrot.slane %v2115, 4
    %v2133 = vsel %vm182, 0.0, %v2132
    %v2134 = vrot.slane %v2119, 4
    %v2135 = vsel %vm182, 0.0, %v2134
    %v2136 = vrot.slane %v2127, 4
    %v2137 = vsel %vm182, 0.0, %v2136
    %v2138 = vrot.slane %v2131, 4
    %v2139 = vsel %vm182, 0.0, %v2138
    %v2140 = vrot.slane %v2071, 4
    %v2141 = vsel %vm182, %v2140, %v2063
    %v2142 = vrot.slane %v2063, 4
    %v2143 = vsel %vm182, %v2071, %v2142
    %v2145 = vunpack.c.l.s4 1983009808
    %v2146 = vunpack.c.0.s8 %v2145
    %v2147 = vperm.slane %v2141, %v2146
    %v2149 = vunpack.c.l.s4 1983009808
    %v2150 = vunpack.c.0.s8 %v2149
    %v2151 = vperm.slane %v2143, %v2150
    %v2152 = vrot.slane %v2075, 4
    %v2153 = vsel %vm182, %v2152, %v2067
    %v2154 = vrot.slane %v2067, 4
    %v2155 = vsel %vm182, %v2075, %v2154
    %v2157 = vunpack.c.l.s4 1983009808
    %v2158 = vunpack.c.0.s8 %v2157
    %v2159 = vperm.slane %v2153, %v2158
    %v2161 = vunpack.c.l.s4 1983009808
    %v2162 = vunpack.c.0.s8 %v2161
    %v2163 = vperm.slane %v2155, %v2162
    %v2164 = vrot.slane %v2159, 4
    %v2165 = vsel %vm182, %v2164, %v2147
    %v2166 = vrot.slane %v2147, 4
    %v2167 = vsel %vm182, %v2159, %v2166
    %v2169 = vunpack.c.l.s4 1934713408
    %v2170 = vunpack.c.0.s8 %v2169
    %v2171 = vperm.slane %v2165, %v2170
    %v2173 = vunpack.c.l.s4 1934713408
    %v2174 = vunpack.c.0.s8 %v2173
    %v2175 = vperm.slane %v2167, %v2174
    %v2176 = vrot.slane %v2163, 4
    %v2177 = vsel %vm182, %v2176, %v2151
    %v2178 = vrot.slane %v2151, 4
    %v2179 = vsel %vm182, %v2163, %v2178
    %v2181 = vunpack.c.l.s4 1934713408
    %v2182 = vunpack.c.0.s8 %v2181
    %v2183 = vperm.slane %v2177, %v2182
    %v2185 = vunpack.c.l.s4 1934713408
    %v2186 = vunpack.c.0.s8 %v2185
    %v2187 = vperm.slane %v2179, %v2186
    %v2188 = vrot.slane %v2171, 4
    %v2189 = vsel %vm182, 0.0, %v2188
    %v2190 = vrot.slane %v2175, 4
    %v2191 = vsel %vm182, 0.0, %v2190
    %v2192 = vrot.slane %v2183, 4
    %v2193 = vsel %vm182, 0.0, %v2192
    %v2194 = vrot.slane %v2187, 4
    %v2195 = vsel %vm182, 0.0, %v2194
    %v2196 = vsel %vm182, %v2134, %v2115
    %v2198 = vunpack.c.l.s4 1983009808
    %v2199 = vunpack.c.0.s8 %v2198
    %v2200 = vperm.slane %v2196, %v2199
    %v2201 = vrot.slane %v2135, 4
    %v2202 = vsel %vm182, %v2201, %v2133
    %v2204 = vunpack.c.l.s4 1983009808
    %v2205 = vunpack.c.0.s8 %v2204
    %v2206 = vperm.slane %v2202, %v2205
    %v2207 = vsel %vm182, %v2138, %v2127
    %v2209 = vunpack.c.l.s4 1983009808
    %v2210 = vunpack.c.0.s8 %v2209
    %v2211 = vperm.slane %v2207, %v2210
    %v2212 = vrot.slane %v2139, 4
    %v2213 = vsel %vm182, %v2212, %v2137
    %v2215 = vunpack.c.l.s4 1983009808
    %v2216 = vunpack.c.0.s8 %v2215
    %v2217 = vperm.slane %v2213, %v2216
    %v2218 = vrot.slane %v2206, 4
    %v2219 = vsel %vm182, %v2218, %v2200
    %v2220 = vrot.slane %v2200, 4
    %v2221 = vsel %vm182, %v2206, %v2220
    %v2223 = vunpack.c.l.s4 1934713408
    %v2224 = vunpack.c.0.s8 %v2223
    %v2225 = vperm.slane %v2219, %v2224
    %v2227 = vunpack.c.l.s4 1934713408
    %v2228 = vunpack.c.0.s8 %v2227
    %v2229 = vperm.slane %v2221, %v2228
    %v2230 = vrot.slane %v2217, 4
    %v2231 = vsel %vm182, %v2230, %v2211
    %v2232 = vrot.slane %v2211, 4
    %v2233 = vsel %vm182, %v2217, %v2232
    %v2235 = vunpack.c.l.s4 1934713408
    %v2236 = vunpack.c.0.s8 %v2235
    %v2237 = vperm.slane %v2231, %v2236
    %v2239 = vunpack.c.l.s4 1934713408
    %v2240 = vunpack.c.0.s8 %v2239
    %v2241 = vperm.slane %v2233, %v2240
    %v2242 = vrot.slane %v2237, 4
    %v2243 = vsel %vm182, %v2242, %v2225
    %v2244 = vrot.slane %v2225, 4
    %v2245 = vsel %vm182, %v2237, %v2244
    %v2246 = vrot.slane %v2241, 4
    %v2247 = vsel %vm182, %v2246, %v2229
    %v2248 = vrot.slane %v2229, 4
    %v2249 = vsel %vm182, %v2241, %v2248
    %v2250 = vsel %vm182, %v2190, %v2171
    %v2252 = vunpack.c.l.s4 1983009808
    %v2253 = vunpack.c.0.s8 %v2252
    %v2254 = vperm.slane %v2250, %v2253
    %v2255 = vrot.slane %v2191, 4
    %v2256 = vsel %vm182, %v2255, %v2189
    %v2258 = vunpack.c.l.s4 1983009808
    %v2259 = vunpack.c.0.s8 %v2258
    %v2260 = vperm.slane %v2256, %v2259
    %v2261 = vsel %vm182, %v2194, %v2183
    %v2263 = vunpack.c.l.s4 1983009808
    %v2264 = vunpack.c.0.s8 %v2263
    %v2265 = vperm.slane %v2261, %v2264
    %v2266 = vrot.slane %v2195, 4
    %v2267 = vsel %vm182, %v2266, %v2193
    %v2269 = vunpack.c.l.s4 1983009808
    %v2270 = vunpack.c.0.s8 %v2269
    %v2271 = vperm.slane %v2267, %v2270
    %v2272 = vrot.slane %v2260, 4
    %v2273 = vsel %vm182, %v2272, %v2254
    %v2274 = vrot.slane %v2254, 4
    %v2275 = vsel %vm182, %v2260, %v2274
    %v2277 = vunpack.c.l.s4 1934713408
    %v2278 = vunpack.c.0.s8 %v2277
    %v2279 = vperm.slane %v2273, %v2278
    %v2281 = vunpack.c.l.s4 1934713408
    %v2282 = vunpack.c.0.s8 %v2281
    %v2283 = vperm.slane %v2275, %v2282
    %v2284 = vrot.slane %v2271, 4
    %v2285 = vsel %vm182, %v2284, %v2265
    %v2286 = vrot.slane %v2265, 4
    %v2287 = vsel %vm182, %v2271, %v2286
    %v2289 = vunpack.c.l.s4 1934713408
    %v2290 = vunpack.c.0.s8 %v2289
    %v2291 = vperm.slane %v2285, %v2290
    %v2293 = vunpack.c.l.s4 1934713408
    %v2294 = vunpack.c.0.s8 %v2293
    %v2295 = vperm.slane %v2287, %v2294
    %v2296 = vrot.slane %v2291, 4
    %v2297 = vsel %vm182, %v2296, %v2279
    %v2298 = vrot.slane %v2279, 4
    %v2299 = vsel %vm182, %v2291, %v2298
    %v2300 = vrot.slane %v2295, 4
    %v2301 = vsel %vm182, %v2300, %v2283
    %v2302 = vrot.slane %v2283, 4
    %v2303 = vsel %vm182, %v2295, %v2302
    %v2304 = vpack.c.bf16 %v2243, %v2243
    %v2305 = vpack.c.bf16 %v2297, %v2297
    %v2306 = vpack.c.bf16 %v2245, %v2245
    %v2307 = vpack.c.bf16 %v2299, %v2299
    %v2308 = vpack.c.bf16 %v2247, %v2247
    %v2309 = vpack.c.bf16 %v2301, %v2301
    %v2310 = vpack.c.bf16 %v2249, %v2249
    %v2311 = vpack.c.bf16 %v2303, %v2303
    %v2314 = vunpack.c.l.b16 %v1790
    %v2315 = vunpack.c.l.b16 %v1791
    %v2316 = vpack.c.b16 %v2315, %v2314
    %v2319 = vunpack.c.l.b16 %v2042
    %v2320 = vunpack.c.l.b16 %v2043
    %v2321 = vpack.c.b16 %v2320, %v2319
    %v2323 = vsel %vm934, %v2316, 0
    %v2326 = vsel %vm934, %v2321, 0
    %2328 = vmatpush.bf16.xpose.msra.mxu0 0
    %2329 = vmatpush.bf16.xpose.msra.mxu0 0
    %2330 = vmatpush.bf16.xpose.msra.mxu0 0
    %2331 = vmatpush.bf16.xpose.msra.mxu0 0
    %2332 = vmatpush.bf16.xpose.msra.mxu0 0
    %2333 = vmatpush.bf16.xpose.msra.mxu0 0
    %2334 = vmatpush.bf16.xpose.msra.mxu0 0
    %2335 = vmatpush.bf16.xpose.msra.mxu0 %v2326
    %2336 = vmatmul.bf16.gmra.mxu0 %v2323
    %v2337 = vpop.f32.mrf.mxu0
    %v2338 = vadd.f32 %v40, %v2337
    %v2339 = vpop.f32.mrf.mxu0
    %v2340 = vadd.f32 %v41, %v2339
    %2341 = vdwg.mxu0
    %v2344 = vunpack.c.l.b16 %v1792
    %v2345 = vunpack.c.l.b16 %v1793
    %v2346 = vpack.c.b16 %v2345, %v2344
    %v2349 = vunpack.c.l.b16 %v2044
    %v2350 = vunpack.c.l.b16 %v2045
    %v2351 = vpack.c.b16 %v2350, %v2349
    %v2353 = vsel %vm934, %v2346, 0
    %v2356 = vsel %vm934, %v2351, 0
    %2358 = vmatpush.bf16.xpose.msra.mxu0 0
    %2359 = vmatpush.bf16.xpose.msra.mxu0 0
    %2360 = vmatpush.bf16.xpose.msra.mxu0 0
    %2361 = vmatpush.bf16.xpose.msra.mxu0 0
    %2362 = vmatpush.bf16.xpose.msra.mxu0 0
    %2363 = vmatpush.bf16.xpose.msra.mxu0 0
    %2364 = vmatpush.bf16.xpose.msra.mxu0 0
    %2365 = vmatpush.bf16.xpose.msra.mxu0 %v2356
    %2366 = vmatmul.bf16.gmra.mxu0 %v2353
    %v2367 = vpop.f32.mrf.mxu0
    %v2368 = vadd.f32 %v40, %v2367
    %v2369 = vpop.f32.mrf.mxu0
    %v2370 = vadd.f32 %v41, %v2369
    %2371 = vdwg.mxu0
    %v2374 = vunpack.c.l.b16 %v1794
    %v2375 = vunpack.c.l.b16 %v1795
    %v2376 = vpack.c.b16 %v2375, %v2374
    %v2379 = vunpack.c.l.b16 %v2046
    %v2380 = vunpack.c.l.b16 %v2047
    %v2381 = vpack.c.b16 %v2380, %v2379
    %v2383 = vsel %vm934, %v2376, 0
    %v2386 = vsel %vm934, %v2381, 0
    %2388 = vmatpush.bf16.xpose.msra.mxu0 0
    %2389 = vmatpush.bf16.xpose.msra.mxu0 0
    %2390 = vmatpush.bf16.xpose.msra.mxu0 0
    %2391 = vmatpush.bf16.xpose.msra.mxu0 0
    %2392 = vmatpush.bf16.xpose.msra.mxu0 0
    %2393 = vmatpush.bf16.xpose.msra.mxu0 0
    %2394 = vmatpush.bf16.xpose.msra.mxu0 0
    %2395 = vmatpush.bf16.xpose.msra.mxu0 %v2386
    %2396 = vmatmul.bf16.gmra.mxu0 %v2383
    %v2397 = vpop.f32.mrf.mxu0
    %v2398 = vadd.f32 %v40, %v2397
    %v2399 = vpop.f32.mrf.mxu0
    %v2400 = vadd.f32 %v41, %v2399
    %2401 = vdwg.mxu0
    %v2404 = vunpack.c.l.b16 %v1796
    %v2405 = vunpack.c.l.b16 %v1797
    %v2406 = vpack.c.b16 %v2405, %v2404
    %v2409 = vunpack.c.l.b16 %v2048
    %v2410 = vunpack.c.l.b16 %v2049
    %v2411 = vpack.c.b16 %v2410, %v2409
    %v2413 = vsel %vm934, %v2406, 0
    %v2416 = vsel %vm934, %v2411, 0
    %2418 = vmatpush.bf16.xpose.msra.mxu0 0
    %2419 = vmatpush.bf16.xpose.msra.mxu0 0
    %2420 = vmatpush.bf16.xpose.msra.mxu0 0
    %2421 = vmatpush.bf16.xpose.msra.mxu0 0
    %2422 = vmatpush.bf16.xpose.msra.mxu0 0
    %2423 = vmatpush.bf16.xpose.msra.mxu0 0
    %2424 = vmatpush.bf16.xpose.msra.mxu0 0
    %2425 = vmatpush.bf16.xpose.msra.mxu0 %v2416
    %2426 = vmatmul.bf16.gmra.mxu0 %v2413
    %v2427 = vpop.f32.mrf.mxu0
    %v2428 = vadd.f32 %v40, %v2427
    %v2429 = vpop.f32.mrf.mxu0
    %v2430 = vadd.f32 %v41, %v2429
    %2431 = vdwg.mxu0
    %v2432 = vmul.f32 %v2338, 1.442695
    %v2433 = vpow.pop %v2432
    %v2434 = vmul.f32 %v2340, 1.442695
    %v2435 = vpow.pop %v2434
    %v2436 = vmul.f32 %v2368, 1.442695
    %v2437 = vpow.pop %v2436
    %v2438 = vmul.f32 %v2370, 1.442695
    %v2439 = vpow.pop %v2438
    %v2440 = vmul.f32 %v2398, 1.442695
    %v2441 = vpow.pop %v2440
    %v2442 = vmul.f32 %v2400, 1.442695
    %v2443 = vpow.pop %v2442
    %v2444 = vmul.f32 %v2428, 1.442695
    %v2445 = vpow.pop %v2444
    %v2446 = vmul.f32 %v2430, 1.442695
    %v2447 = vpow.pop %v2446
    %v2448 = vsel %vm1061, %v2433, 0.0
    %2449 = vadd.xlane.f32.xlu0 %v2448
    %v2450 = vpop.xlane.xlu0 %2449
    %v2451 = vsel %vm1061, %v2435, 0.0
    %2452 = vadd.xlane.f32.xlu0 %v2451
    %v2453 = vpop.xlane.xlu0 %2452
    %v2454 = vsel %vm1061, %v2437, 0.0
    %2455 = vadd.xlane.f32.xlu0 %v2454
    %v2456 = vpop.xlane.xlu0 %2455
    %v2457 = vsel %vm1061, %v2439, 0.0
    %2458 = vadd.xlane.f32.xlu0 %v2457
    %v2459 = vpop.xlane.xlu0 %2458
    %v2460 = vsel %vm1061, %v2441, 0.0
    %2461 = vadd.xlane.f32.xlu0 %v2460
    %v2462 = vpop.xlane.xlu0 %2461
    %v2463 = vsel %vm1061, %v2443, 0.0
    %2464 = vadd.xlane.f32.xlu0 %v2463
    %v2465 = vpop.xlane.xlu0 %2464
    %v2466 = vsel %vm1061, %v2445, 0.0
    %2467 = vadd.xlane.f32.xlu0 %v2466
    %v2468 = vpop.xlane.xlu0 %2467
    %v2469 = vsel %vm1061, %v2447, 0.0
    %2470 = vadd.xlane.f32.xlu0 %v2469
    %v2471 = vpop.xlane.xlu0 %2470
    %v2472 = vrcp.pop %v2450
    %v2473 = vrcp.pop %v2453
    %v2474 = vrcp.pop %v2456
    %v2475 = vrcp.pop %v2459
    %v2476 = vrcp.pop %v2462
    %v2477 = vrcp.pop %v2465
    %v2478 = vrcp.pop %v2468
    %v2479 = vrcp.pop %v2471
    %v2480 = vmul.f32 %v2433, %v2472
    %v2481 = vmul.f32 %v2435, %v2473
    %v2482 = vmul.f32 %v2437, %v2474
    %v2483 = vmul.f32 %v2439, %v2475
    %v2484 = vmul.f32 %v2441, %v2476
    %v2485 = vmul.f32 %v2443, %v2477
    %v2486 = vmul.f32 %v2445, %v2478
    %v2487 = vmul.f32 %v2447, %v2479
    %v2488 = vpack.c.bf16 %v2480, %v2480
    %v2489 = vpack.c.bf16 %v2481, %v2481
    %v2490 = vpack.c.bf16 %v2482, %v2482
    %v2491 = vpack.c.bf16 %v2483, %v2483
    %v2492 = vpack.c.bf16 %v2484, %v2484
    %v2493 = vpack.c.bf16 %v2485, %v2485
    %v2494 = vpack.c.bf16 %v2486, %v2486
    %v2495 = vpack.c.bf16 %v2487, %v2487
    %v2498 = vunpack.c.l.b16 %v2488
    %v2499 = vunpack.c.l.b16 %v2489
    %v2500 = vpack.c.b16 %v2499, %v2498
    %v2503 = vunpack.c.l.b16 %v2304
    %v2504 = vunpack.c.l.b16 %v2305
    %v2505 = vpack.c.b16 %v2504, %v2503
    %v2508 = vsel %vm1061, %v2500, 0
    %2510 = vmatpush.bf16.msra.mxu0 0
    %2511 = vmatpush.bf16.msra.mxu0 0
    %2512 = vmatpush.bf16.msra.mxu0 0
    %2513 = vmatpush.bf16.msra.mxu0 0
    %2514 = vmatpush.bf16.msra.mxu0 0
    %2515 = vmatpush.bf16.msra.mxu0 0
    %2516 = vmatpush.bf16.msra.mxu0 0
    %2517 = vmatpush.bf16.msra.mxu0 %v2505
    %2518 = vmatmul.bf16.gmra.mxu0 %v2508
    %v2519 = vpop.f32.mrf.mxu0
    %v2520 = vadd.f32 0.0, %v2519
    %v2521 = vpop.f32.mrf.mxu0
    %v2522 = vadd.f32 0.0, %v2521
    %2523 = vdwg.mxu0
    %v2526 = vunpack.c.l.b16 %v2490
    %v2527 = vunpack.c.l.b16 %v2491
    %v2528 = vpack.c.b16 %v2527, %v2526
    %v2531 = vunpack.c.l.b16 %v2306
    %v2532 = vunpack.c.l.b16 %v2307
    %v2533 = vpack.c.b16 %v2532, %v2531
    %v2536 = vsel %vm1061, %v2528, 0
    %2538 = vmatpush.bf16.msra.mxu0 0
    %2539 = vmatpush.bf16.msra.mxu0 0
    %2540 = vmatpush.bf16.msra.mxu0 0
    %2541 = vmatpush.bf16.msra.mxu0 0
    %2542 = vmatpush.bf16.msra.mxu0 0
    %2543 = vmatpush.bf16.msra.mxu0 0
    %2544 = vmatpush.bf16.msra.mxu0 0
    %2545 = vmatpush.bf16.msra.mxu0 %v2533
    %2546 = vmatmul.bf16.gmra.mxu0 %v2536
    %v2547 = vpop.f32.mrf.mxu0
    %v2548 = vadd.f32 0.0, %v2547
    %v2549 = vpop.f32.mrf.mxu0
    %v2550 = vadd.f32 0.0, %v2549
    %2551 = vdwg.mxu0
    %v2554 = vunpack.c.l.b16 %v2492
    %v2555 = vunpack.c.l.b16 %v2493
    %v2556 = vpack.c.b16 %v2555, %v2554
    %v2559 = vunpack.c.l.b16 %v2308
    %v2560 = vunpack.c.l.b16 %v2309
    %v2561 = vpack.c.b16 %v2560, %v2559
    %v2564 = vsel %vm1061, %v2556, 0
    %2566 = vmatpush.bf16.msra.mxu0 0
    %2567 = vmatpush.bf16.msra.mxu0 0
    %2568 = vmatpush.bf16.msra.mxu0 0
    %2569 = vmatpush.bf16.msra.mxu0 0
    %2570 = vmatpush.bf16.msra.mxu0 0
    %2571 = vmatpush.bf16.msra.mxu0 0
    %2572 = vmatpush.bf16.msra.mxu0 0
    %2573 = vmatpush.bf16.msra.mxu0 %v2561
    %2574 = vmatmul.bf16.gmra.mxu0 %v2564
    %v2575 = vpop.f32.mrf.mxu0
    %v2576 = vadd.f32 0.0, %v2575
    %v2577 = vpop.f32.mrf.mxu0
    %v2578 = vadd.f32 0.0, %v2577
    %2579 = vdwg.mxu0
    %v2582 = vunpack.c.l.b16 %v2494
    %v2583 = vunpack.c.l.b16 %v2495
    %v2584 = vpack.c.b16 %v2583, %v2582
    %v2587 = vunpack.c.l.b16 %v2310
    %v2588 = vunpack.c.l.b16 %v2311
    %v2589 = vpack.c.b16 %v2588, %v2587
    %v2592 = vsel %vm1061, %v2584, 0
    %2594 = vmatpush.bf16.msra.mxu0 0
    %2595 = vmatpush.bf16.msra.mxu0 0
    %2596 = vmatpush.bf16.msra.mxu0 0
    %2597 = vmatpush.bf16.msra.mxu0 0
    %2598 = vmatpush.bf16.msra.mxu0 0
    %2599 = vmatpush.bf16.msra.mxu0 0
    %2600 = vmatpush.bf16.msra.mxu0 0
    %2601 = vmatpush.bf16.msra.mxu0 %v2589
    %2602 = vmatmul.bf16.gmra.mxu0 %v2592
    %v2603 = vpop.f32.mrf.mxu0
    %v2604 = vadd.f32 0.0, %v2603
    %v2605 = vpop.f32.mrf.mxu0
    %v2606 = vadd.f32 0.0, %v2605
    %2607 = vdwg.mxu0
    %v2608 = vsel %vm129, %v2520, 0.0
    %v2609 = vsel %vm129, %v2548, 0.0
    %v2610 = vadd.f32 %v2608, %v2609
    %v2611 = vsel %vm129, %v2576, 0.0
    %v2612 = vadd.f32 %v2610, %v2611
    %v2613 = vsel %vm129, %v2604, 0.0
    %v2614 = vadd.f32 %v2612, %v2613
    %v2615 = vsel %vm129, %v2522, 0.0
    %v2616 = vsel %vm129, %v2550, 0.0
    %v2617 = vadd.f32 %v2615, %v2616
    %v2618 = vsel %vm129, %v2578, 0.0
    %v2619 = vadd.f32 %v2617, %v2618
    %v2620 = vsel %vm129, %v2606, 0.0
    %v2621 = vadd.f32 %v2619, %v2620
    %v2622 = vperm.slane %v1485, 0
    %v2623 = vadd.f32 %v2614, %v2622
    %v2624 = vadd.f32 %v2621, %v2622
    %v2625 = vadd.f32 %v1482, %v2623
    %v2626 = vadd.f32 %v1483, %v2624
    %v2627 = vsel %vm129, %v2625, 0.0
    %2628 = vadd.xlane.f32.xlu0 %v2627
    %v2629 = vpop.xlane.xlu0 %2628
    %v2630 = vsel %vm129, %v2626, 0.0
    %2631 = vadd.xlane.f32.xlu0 %v2630
    %v2632 = vpop.xlane.xlu0 %2631
    %v2633 = vmul.f32 %v2629, %v1253
    %v2634 = vmul.f32 %v2632, %v1253
    %v2635 = vsub.f32 %v2625, %v2633
    %v2636 = vsub.f32 %v2626, %v2634
    %v2637 = vmul.f32 %v2635, %v2635
    %v2638 = vmul.f32 %v2636, %v2636
    %v2639 = vsel %vm129, %v2637, 0.0
    %2640 = vadd.xlane.f32.xlu0 %v2639
    %v2641 = vpop.xlane.xlu0 %2640
    %v2642 = vsel %vm129, %v2638, 0.0
    %2643 = vadd.xlane.f32.xlu0 %v2642
    %v2644 = vpop.xlane.xlu0 %2643
    %v2645 = vmul.f32 %v2641, %v1253
    %v2646 = vmul.f32 %v2644, %v1253
    %v2647 = vadd.f32 %v2645, 1e-05
    %v2648 = vadd.f32 %v2646, 1e-05
    %v2649 = vrsqrt.pop %v2647
    %v2650 = vmul.f32 %v2649, %v2647
    %v2651 = vmul.f32 %v2650, %v2649
    %v2652 = vmul.f32 0.5, %v2651
    %v2653 = vsub.f32 1.5, %v2652
    %v2654 = vmul.f32 %v2649, %v2653
    %vm2655 = vweird.f32 %v2647
    %vm2656 = vweird.f32 %v2649
    %vm2657 = vmor %vm2655, %vm2656
    %v2658 = vsel %vm2657, %v2649, %v2654
    %v2659 = vrsqrt.pop %v2648
    %v2660 = vmul.f32 %v2659, %v2648
    %v2661 = vmul.f32 %v2660, %v2659
    %v2662 = vmul.f32 0.5, %v2661
    %v2663 = vsub.f32 1.5, %v2662
    %v2664 = vmul.f32 %v2659, %v2663
    %vm2665 = vweird.f32 %v2648
    %vm2666 = vweird.f32 %v2659
    %vm2667 = vmor %vm2665, %vm2666
    %v2668 = vsel %vm2667, %v2659, %v2664
    %v2669 = vmul.f32 %v2635, %v2658
    %v2670 = vmul.f32 %v2636, %v2668
    %v2671 = vperm.slane %v1485, 2
    %v2672 = vmul.f32 %v2669, %v2671
    %v2673 = vmul.f32 %v2670, %v2671
    %v2674 = vperm.slane %v1485, 3
    %v2675 = vadd.f32 %v2672, %v2674
    %v2676 = vadd.f32 %v2673, %v2674
    %v2677 = vpack.c.bf16 %v2676, %v2675
    %s2678 = scalar_lea.vmem %s6, 16
    %v2679 = vld [vmem:[%s2678] sm:$0xf]
    %v2680 = vld [vmem:[%s2678 + $0x4] sm:$0xf]
    %v2681 = vld [vmem:[%s2678 + $0x8] sm:$0xf]
    %v2682 = vld [vmem:[%s2678 + $0xc] sm:$0xf]
    %v2683 = vld [vmem:[%s7 + $0x1] sm:$0x1]
    %v2684 = vperm.slane %v2683, 0
    %v2689 = vunpack.c.l.b16 %v2679
    %v2690 = vunpack.c.l.b16 %v2680
    %v2691 = vunpack.c.l.b16 %v2681
    %v2692 = vunpack.c.l.b16 %v2682
    %v2693 = vpack.c.b16 %v2690, %v2689
    %v2694 = vpack.c.b16 %v2692, %v2691
    %v2698 = vsel %vm129, %v2677, 0
    %2700 = vmatpush.bf16.msra.mxu0 0
    %2701 = vmatpush.bf16.msra.mxu0 0
    %2702 = vmatpush.bf16.msra.mxu0 0
    %2703 = vmatpush.bf16.msra.mxu0 0
    %2704 = vmatpush.bf16.msra.mxu0 0
    %2705 = vmatpush.bf16.msra.mxu0 0
    %2706 = vmatpush.bf16.msra.mxu0 %v2694
    %2707 = vmatpush.bf16.msra.mxu0 %v2693
    %2708 = vmatmul.bf16.gmra.mxu0 %v2698
    %v2709 = vpop.f32.mrf.mxu0
    %v2710 = vadd.f32 %v2684, %v2709
    %v2711 = vpop.f32.mrf.mxu0
    %v2712 = vadd.f32 %v2684, %v2711
    %2713 = vdwg.mxu0
    %v2714 = vmul.f32 %v2710, 0.5
    %v2715 = vmul.f32 %v2712, 0.5
    %v2716 = vmul.f32 %v2710, 0.044715
    %v2717 = vmul.f32 %v2712, 0.044715
    %v2718 = vmul.f32 %v2716, %v2710
    %v2719 = vmul.f32 %v2717, %v2712
    %v2720 = vmul.f32 %v2718, %v2710
    %v2721 = vmul.f32 %v2719, %v2712
    %v2722 = vadd.f32 %v2710, %v2720
    %v2723 = vadd.f32 %v2712, %v2721
    %v2724 = vmul.f32 %v2722, 0.7978846
    %v2725 = vmul.f32 %v2723, 0.7978846
    %v2726 = vtanh.pop %v2724
    %v2727 = vtanh.pop %v2725
    %v2728 = vadd.f32 %v2726, 1.0
    %v2729 = vadd.f32 %v2727, 1.0
    %v2730 = vmul.f32 %v2714, %v2728
    %v2731 = vmul.f32 %v2715, %v2729
    %v2732 = vpack.c.bf16 %v2731, %v2730
    %s2733 = scalar_lea.vmem %s8, 64
    %v2734 = vld [vmem:[%s2733] sm:$0xf]
    %v2735 = vld [vmem:[%s2733 + $0x4] sm:$0xf]
    %v2736 = vld [vmem:[%s2733 + $0x8] sm:$0xf]
    %v2737 = vld [vmem:[%s2733 + $0xc] sm:$0xf]
    %v2738 = vld [vmem:[%s2733 + $0x10] sm:$0xf]
    %v2739 = vld [vmem:[%s2733 + $0x14] sm:$0xf]
    %v2740 = vld [vmem:[%s2733 + $0x18] sm:$0xf]
    %v2741 = vld [vmem:[%s2733 + $0x1c] sm:$0xf]
    %v2742 = vld [vmem:[%s2733 + $0x20] sm:$0xf]
    %v2743 = vld [vmem:[%s2733 + $0x24] sm:$0xf]
    %v2744 = vld [vmem:[%s2733 + $0x28] sm:$0xf]
    %v2745 = vld [vmem:[%s2733 + $0x2c] sm:$0xf]
    %v2746 = vld [vmem:[%s2733 + $0x30] sm:$0xf]
    %v2747 = vld [vmem:[%s2733 + $0x34] sm:$0xf]
    %v2748 = vld [vmem:[%s2733 + $0x38] sm:$0xf]
    %v2749 = vld [vmem:[%s2733 + $0x3c] sm:$0xf]
    %v2750 = vperm.slane %v1485, 1
    %v2767 = vunpack.c.l.b16 %v2734
    %v2768 = vunpack.c.l.b16 %v2735
    %v2769 = vunpack.c.l.b16 %v2736
    %v2770 = vunpack.c.l.b16 %v2737
    %v2771 = vunpack.c.l.b16 %v2738
    %v2772 = vunpack.c.l.b16 %v2739
    %v2773 = vunpack.c.l.b16 %v2740
    %v2774 = vunpack.c.l.b16 %v2741
    %v2775 = vunpack.c.l.b16 %v2742
    %v2776 = vunpack.c.l.b16 %v2743
    %v2777 = vunpack.c.l.b16 %v2744
    %v2778 = vunpack.c.l.b16 %v2745
    %v2779 = vunpack.c.l.b16 %v2746
    %v2780 = vunpack.c.l.b16 %v2747
    %v2781 = vunpack.c.l.b16 %v2748
    %v2782 = vunpack.c.l.b16 %v2749
    %v2783 = vpack.c.b16 %v2768, %v2767
    %v2784 = vpack.c.b16 %v2770, %v2769
    %v2785 = vpack.c.b16 %v2772, %v2771
    %v2786 = vpack.c.b16 %v2774, %v2773
    %v2787 = vpack.c.b16 %v2776, %v2775
    %v2788 = vpack.c.b16 %v2778, %v2777
    %v2789 = vpack.c.b16 %v2780, %v2779
    %v2790 = vpack.c.b16 %v2782, %v2781
    %2799 = vmatpush.bf16.msra.mxu0 %v2790
    %2800 = vmatpush.bf16.msra.mxu0 %v2789
    %2801 = vmatpush.bf16.msra.mxu0 %v2788
    %2802 = vmatpush.bf16.msra.mxu0 %v2787
    %2803 = vmatpush.bf16.msra.mxu0 %v2786
    %2804 = vmatpush.bf16.msra.mxu0 %v2785
    %2805 = vmatpush.bf16.msra.mxu0 %v2784
    %2806 = vmatpush.bf16.msra.mxu0 %v2783
    %2807 = vmatmul.bf16.gmra.mxu0 %v2732
    %v2808 = vpop.f32.mrf.mxu0
    %v2809 = vadd.f32 %v2750, %v2808
    %v2810 = vpop.f32.mrf.mxu0
    %v2811 = vadd.f32 %v2750, %v2810
    %2812 = vdwg.mxu0
    %v2813 = vadd.f32 %v2675, %v2809
    %v2814 = vadd.f32 %v2676, %v2811
    %v2815 = vsel %vm129, %v2813, 0.0
    %2816 = vadd.xlane.f32.xlu0 %v2815
    %v2817 = vpop.xlane.xlu0 %2816
    %v2818 = vsel %vm129, %v2814, 0.0
    %2819 = vadd.xlane.f32.xlu0 %v2818
    %v2820 = vpop.xlane.xlu0 %2819
    %v2821 = vmul.f32 %v2817, %v1253
    %v2822 = vmul.f32 %v2820, %v1253
    %v2823 = vsub.f32 %v2813, %v2821
    %v2824 = vsub.f32 %v2814, %v2822
    %v2825 = vmul.f32 %v2823, %v2823
    %v2826 = vmul.f32 %v2824, %v2824
    %v2827 = vsel %vm129, %v2825, 0.0
    %2828 = vadd.xlane.f32.xlu0 %v2827
    %v2829 = vpop.xlane.xlu0 %2828
    %v2830 = vsel %vm129, %v2826, 0.0
    %2831 = vadd.xlane.f32.xlu0 %v2830
    %v2832 = vpop.xlane.xlu0 %2831
    %v2833 = vmul.f32 %v2829, %v1253
    %v2834 = vmul.f32 %v2832, %v1253
    %v2835 = vadd.f32 %v2833, 1e-05
    %v2836 = vadd.f32 %v2834, 1e-05
    %v2837 = vrsqrt.pop %v2835
    %v2838 = vmul.f32 %v2837, %v2835
    %v2839 = vmul.f32 %v2838, %v2837
    %v2840 = vmul.f32 0.5, %v2839
    %v2841 = vsub.f32 1.5, %v2840
    %v2842 = vmul.f32 %v2837, %v2841
    %vm2843 = vweird.f32 %v2835
    %vm2844 = vweird.f32 %v2837
    %vm2845 = vmor %vm2843, %vm2844
    %v2846 = vsel %vm2845, %v2837, %v2842
    %v2847 = vrsqrt.pop %v2836
    %v2848 = vmul.f32 %v2847, %v2836
    %v2849 = vmul.f32 %v2848, %v2847
    %v2850 = vmul.f32 0.5, %v2849
    %v2851 = vsub.f32 1.5, %v2850
    %v2852 = vmul.f32 %v2847, %v2851
    %vm2853 = vweird.f32 %v2836
    %vm2854 = vweird.f32 %v2847
    %vm2855 = vmor %vm2853, %vm2854
    %v2856 = vsel %vm2855, %v2847, %v2852
    %v2857 = vmul.f32 %v2823, %v2846
    %v2858 = vmul.f32 %v2824, %v2856
    %v2859 = vperm.slane %v1485, 4
    %v2860 = vmul.f32 %v2857, %v2859
    %v2861 = vmul.f32 %v2858, %v2859
    %v2862 = vperm.slane %v1485, 5
    %v2863 = vadd.f32 %v2860, %v2862
    %v2864 = vadd.f32 %v2861, %v2862
    %v2865 = vld [vmem:[%s10] sm:$0x1]
    %v2866 = vld [vmem:[%s10 + $0x1] sm:$0x1]
    %v2867 = vsel %vm129, %v2863, 0.0
    %2868 = vadd.xlane.f32.xlu0 %v2867
    %v2869 = vpop.xlane.xlu0 %2868
    %v2870 = vsel %vm129, %v2864, 0.0
    %2871 = vadd.xlane.f32.xlu0 %v2870
    %v2872 = vpop.xlane.xlu0 %2871
    %v2873 = vmul.f32 %v2869, %v1253
    %v2874 = vmul.f32 %v2872, %v1253
    %v2875 = vsub.f32 %v2863, %v2873
    %v2876 = vsub.f32 %v2864, %v2874
    %v2877 = vmul.f32 %v2875, %v2875
    %v2878 = vmul.f32 %v2876, %v2876
    %v2879 = vsel %vm129, %v2877, 0.0
    %2880 = vadd.xlane.f32.xlu0 %v2879
    %v2881 = vpop.xlane.xlu0 %2880
    %v2882 = vsel %vm129, %v2878, 0.0
    %2883 = vadd.xlane.f32.xlu0 %v2882
    %v2884 = vpop.xlane.xlu0 %2883
    %v2885 = vmul.f32 %v2881, %v1253
    %v2886 = vmul.f32 %v2884, %v1253
    %v2887 = vadd.f32 %v2885, 1e-05
    %v2888 = vadd.f32 %v2886, 1e-05
    %v2889 = vrsqrt.pop %v2887
    %v2890 = vmul.f32 %v2889, %v2887
    %v2891 = vmul.f32 %v2890, %v2889
    %v2892 = vmul.f32 0.5, %v2891
    %v2893 = vsub.f32 1.5, %v2892
    %v2894 = vmul.f32 %v2889, %v2893
    %vm2895 = vweird.f32 %v2887
    %vm2896 = vweird.f32 %v2889
    %vm2897 = vmor %vm2895, %vm2896
    %v2898 = vsel %vm2897, %v2889, %v2894
    %v2899 = vrsqrt.pop %v2888
    %v2900 = vmul.f32 %v2899, %v2888
    %v2901 = vmul.f32 %v2900, %v2899
    %v2902 = vmul.f32 0.5, %v2901
    %v2903 = vsub.f32 1.5, %v2902
    %v2904 = vmul.f32 %v2899, %v2903
    %vm2905 = vweird.f32 %v2888
    %vm2906 = vweird.f32 %v2899
    %vm2907 = vmor %vm2905, %vm2906
    %v2908 = vsel %vm2907, %v2899, %v2904
    %v2909 = vmul.f32 %v2875, %v2898
    %v2910 = vmul.f32 %v2876, %v2908
    %v2911 = vperm.slane %v2865, 0
    %v2912 = vmul.f32 %v2909, %v2911
    %v2913 = vmul.f32 %v2910, %v2911
    %v2914 = vperm.slane %v2866, 0
    %v2915 = vadd.f32 %v2912, %v2914
    %v2916 = vadd.f32 %v2913, %v2914
    %2917 = vst.msk [vmem:[#allocation2] sm:$0xff] %vm129, %v2915
    %2918 = vst.msk [vmem:[#allocation2 + $0x8] sm:$0xff] %vm129, %v2916
    // Predicated region
    $region46: #{padding_aware_encoder.1} parent=1 // pred_check
      _
    $region47: #{padding_aware_encoder.1} parent=1 // pred_check_branch
      %2920 = sbr.rel (0) target = $region49
    $region48: #{padding_aware_encoder.1} parent=1 // pred_region
      %2922 = vsyncadd [#allocation3], 0
      %s2923 = sshll.u32 [#allocation2], 4
      %s2924 = int_to_ptr.vmem [resolvable:$true] %s2923
      %s2925 = sshll.u32 %s11, 4
      %s2926 = int_to_ptr.hbm [resolvable:$true] %s2925
      %2931 = dma.vmem_to_hbm [thread:$0]  %s2924, 256, %s2926, [#allocation3], 128, 128, 8
    $region49: #{padding_aware_encoder.1} parent=1 // pred_fallthru
      _
    // Predicated region
    $region50: #{padding_aware_encoder.1} parent=1 // pred_check
      _
    $region51: #{padding_aware_encoder.1} parent=1 // pred_check_branch
      %2933 = sbr.rel (0) target = $region53
    $region52: #{padding_aware_encoder.1} parent=1 // pred_region
      %2935 = dma.done [#allocation3], 256
    $region53: #{padding_aware_encoder.1} parent=1 // pred_fallthru
      _
    %2936 = vsyncpa [#allocation3], 1

</llo_original>
